<compile_context>
chip_gen: v6e
topology: v6e:2x2x1
jax: 0.10.0
libtpu: 0.0.40
codegen_flags: <defaults>
</compile_context>

<pallas_src>
import jax
import jax.numpy as jnp
import numpy as np
from jax.experimental import pallas as pl
from jax.experimental.pallas import tpu as pltpu

INPUT_SIZE = 2
N_HIDDEN1 = 800
N_HIDDEN2 = 400
OUTPUT_SIZE = 2

H1_PAD = 896    # 800 rounded up to a multiple of 128 lanes
H2_PAD = 512    # 400 rounded up to a multiple of 128 lanes
OUT_PAD = 128   # lane-dense output slab; real columns are [:, :OUTPUT_SIZE]


def _round_up(x, m):
    return ((x + m - 1) // m) * m


def _mlp_kernel(x_ref, w1_ref, b1_ref, w2_ref, b2_ref, w3_ref, b3_ref, o_ref):
    x = x_ref[...]                       # (TB, 2)   f32
    w1 = w1_ref[...]                     # (2, H1_PAD) f32

    # Layer 1 (K=2): two VPU broadcast FMAs (MXU would be <2% utilized here).
    h1 = x[:, 0:1] * w1[0:1, :] + x[:, 1:2] * w1[1:2, :] + b1_ref[...]
    h1 = jnp.maximum(h1, 0.0)            # (TB, H1_PAD) f32

    # Layer 2: bf16 MXU matmul (TB,896)x(896,512), f32 accumulate.
    h2 = jnp.dot(h1.astype(jnp.bfloat16), w2_ref[...],
                 preferred_element_type=jnp.float32)
    h2 = jnp.maximum(h2 + b2_ref[...], 0.0)   # (TB, H2_PAD) f32

    # Layer 3: bf16 MXU matmul against (H2_PAD, 128) zero-padded w3.
    # One pass over h2, and the output store is a lane-dense unmasked slab.
    o = jnp.dot(h2.astype(jnp.bfloat16), w3_ref[...],
                preferred_element_type=jnp.float32)   # (TB, OUT_PAD)
    o_ref[...] = (o + b3_ref[...]).astype(o_ref.dtype)


def nonlinear_regression_forward(x, params, *, tb=1024):
    """x: (B, INPUT_SIZE) float32. params: dict of w1,b1,w2,b2,w3,b3 (unpadded)."""
    B = x.shape[0]

    # Zero-pad hidden/output dims to lane multiples; padded columns stay exactly
    # zero through ReLU.  Big weights (w2, w3) converted to bf16 once here.
    w1 = jnp.pad(params["w1"], ((0, 0), (0, H1_PAD - N_HIDDEN1)))
    b1 = jnp.pad(params["b1"], ((0, 0), (0, H1_PAD - N_HIDDEN1)))
    w2 = jnp.pad(params["w2"],
                 ((0, H1_PAD - N_HIDDEN1), (0, H2_PAD - N_HIDDEN2))
                 ).astype(jnp.bfloat16)
    b2 = jnp.pad(params["b2"], ((0, 0), (0, H2_PAD - N_HIDDEN2)))
    w3 = jnp.pad(params["w3"],
                 ((0, H2_PAD - N_HIDDEN2), (0, OUT_PAD - OUTPUT_SIZE))
                 ).astype(jnp.bfloat16)
    b3 = jnp.pad(params["b3"], ((0, 0), (0, OUT_PAD - OUTPUT_SIZE)))

    # Batch tile: multiple of 8 sublanes, capped at 1024 rows, and chosen so
    # that (when B allows) there are >= 4 batch tiles (TensorCore sharding +
    # per-step-overhead amortization).
    tb = max(8, min(_round_up(tb, 8), 1024))
    per_tile = _round_up(pl.cdiv(B, 4), 8)
    tb = min(tb, max(per_tile, 8))
    b_pad = _round_up(B, tb)
    if b_pad != B:
        x = jnp.pad(x, ((0, b_pad - B), (0, 0)))

    grid = (b_pad // tb,)
    const = lambda i: (0, 0)   # weights/biases: same block every step -> VMEM-resident

    flops = 2 * b_pad * (INPUT_SIZE * H1_PAD
                         + H1_PAD * H2_PAD
                         + H2_PAD * OUT_PAD)
    bytes_accessed = (
        4 * (INPUT_SIZE * H1_PAD + H1_PAD)          # w1, b1 (f32)
        + 2 * (H1_PAD * H2_PAD)                     # w2 (bf16)
        + 4 * H2_PAD                                # b2
        + 2 * (H2_PAD * OUT_PAD)                    # w3 (bf16)
        + 4 * OUT_PAD                               # b3
        + 4 * b_pad * INPUT_SIZE                    # x
        + 4 * b_pad * OUT_PAD                       # out slab
    )

    out = pl.pallas_call(
        _mlp_kernel,
        out_shape=jax.ShapeDtypeStruct((b_pad, OUT_PAD), jnp.float32),
        grid=grid,
        in_specs=[
            pl.BlockSpec((tb, INPUT_SIZE), lambda i: (i, 0)),   # x: tiled over batch
            pl.BlockSpec((INPUT_SIZE, H1_PAD), const),          # w1
            pl.BlockSpec((1, H1_PAD), const),                   # b1
            pl.BlockSpec((H1_PAD, H2_PAD), const),              # w2 (bf16)
            pl.BlockSpec((1, H2_PAD), const),                   # b2
            pl.BlockSpec((H2_PAD, OUT_PAD), const),             # w3 (bf16, padded)
            pl.BlockSpec((1, OUT_PAD), const),                  # b3 (padded)
        ],
        out_specs=pl.BlockSpec((tb, OUT_PAD), lambda i: (i, 0)),
        compiler_params=pltpu.CompilerParams(
            dimension_semantics=("parallel",),     # shard batch tiles across TCs
            vmem_limit_bytes=32 * 1024 * 1024,     # explicit: safe on v5e/v6e/v7x
        ),
        cost_estimate=pl.CostEstimate(
            flops=flops, transcendentals=0, bytes_accessed=bytes_accessed),
    )(x, w1, b1, w2, b2, w3, b3)

    return out[:B, :OUTPUT_SIZE]


def init_params(key):
    """Deterministic init matching nn.Linear's U(-1/sqrt(fan_in), 1/sqrt(fan_in))."""
    keys = jax.random.split(key, 6)

    def linear(kw, kb, fan_in, fan_out):
        bound = 1.0 / np.sqrt(fan_in)
        w = jax.random.uniform(kw, (fan_in, fan_out), jnp.float32, -bound, bound)
        b = jax.random.uniform(kb, (1, fan_out), jnp.float32, -bound, bound)
        return w, b

    w1, b1 = linear(keys[0], keys[1], INPUT_SIZE, N_HIDDEN1)
    w2, b2 = linear(keys[2], keys[3], N_HIDDEN1, N_HIDDEN2)
    w3, b3 = linear(keys[4], keys[5], N_HIDDEN2, OUTPUT_SIZE)
    return {"w1": w1, "b1": b1, "w2": w2, "b2": b2, "w3": w3, "b3": b3}


def _reference_f32(x, p):
    h1 = jnp.maximum(x @ p["w1"] + p["b1"], 0.0)
    h2 = jnp.maximum(h1 @ p["w2"] + p["b2"], 0.0)
    return h2 @ p["w3"] + p["b3"]


def _reference_bf16(x, p):
    # Mirrors the kernel's quantization (bf16 matmul operands, f32 accumulate).
    h1 = jnp.maximum(x @ p["w1"] + p["b1"], 0.0)
    h2 = jnp.dot(h1.astype(jnp.bfloat16), p["w2"].astype(jnp.bfloat16),
                 preferred_element_type=jnp.float32) + p["b2"]
    h2 = jnp.maximum(h2, 0.0)
    return jnp.dot(h2.astype(jnp.bfloat16), p["w3"].astype(jnp.bfloat16),
                   preferred_element_type=jnp.float32) + p["b3"]


if __name__ == "__main__":
    key = jax.random.PRNGKey(0)
    k_param, k_x = jax.random.split(key)
    params = init_params(k_param)

    batch = 8
    x = jax.random.normal(k_x, (batch, INPUT_SIZE), dtype=jnp.float32)

    out = nonlinear_regression_forward(x, params)
    out = jax.block_until_ready(out)

    # Tight check against a reference with matching bf16 matmul quantization,
    # and a looser check against the exact f32 PyTorch-equivalent math.
    ref_bf16 = _reference_bf16(x, params)
    np.testing.assert_allclose(np.asarray(out), np.asarray(ref_bf16),
                               rtol=2e-3, atol=2e-3)
    ref_f32 = _reference_f32(x, params)
    np.testing.assert_allclose(np.asarray(out), np.asarray(ref_f32),
                               rtol=5e-2, atol=5e-2)

    print("KERNEL_OK")
</pallas_src>

<mosaic_0001>
module attributes {stable_mosaic.version = 11 : i64} {
  func.func @_mlp_kernel(%arg0: i32, %arg1: memref<8x2xf32, #tpu.memory_space<vmem>>, %arg2: memref<2x896xf32, #tpu.memory_space<vmem>>, %arg3: memref<1x896xf32, #tpu.memory_space<vmem>>, %arg4: memref<896x512xbf16, #tpu.memory_space<vmem>>, %arg5: memref<1x512xf32, #tpu.memory_space<vmem>>, %arg6: memref<512x128xbf16, #tpu.memory_space<vmem>>, %arg7: memref<1x128xf32, #tpu.memory_space<vmem>>, %arg8: memref<8x128xf32, #tpu.memory_space<vmem>>) attributes {dimension_semantics = [#tpu.dimension_semantics<parallel>], iteration_bounds = array<i64: 1>, scalar_prefetch = 0 : i64, scratch_operands = 0 : i64, tpu.core_type = #tpu.core_type<tc>, window_params = [{transform_indices = @transform_0, window_bounds = array<i64: 8, 2>}, {pipeline_mode = #tpu.pipeline_mode<synchronous>, transform_indices = @transform_1, window_bounds = array<i64: 2, 896>}, {pipeline_mode = #tpu.pipeline_mode<synchronous>, transform_indices = @transform_2, window_bounds = array<i64: 1, 896>}, {pipeline_mode = #tpu.pipeline_mode<synchronous>, transform_indices = @transform_3, window_bounds = array<i64: 896, 512>}, {pipeline_mode = #tpu.pipeline_mode<synchronous>, transform_indices = @transform_4, window_bounds = array<i64: 1, 512>}, {pipeline_mode = #tpu.pipeline_mode<synchronous>, transform_indices = @transform_5, window_bounds = array<i64: 512, 128>}, {pipeline_mode = #tpu.pipeline_mode<synchronous>, transform_indices = @transform_6, window_bounds = array<i64: 1, 128>}, {transform_indices = @transform_7, window_bounds = array<i64: 8, 128>}]} {
    %c0 = arith.constant 0 : index
    %c0_0 = arith.constant 0 : index
    %0 = vector.load %arg1[%c0, %c0_0] : memref<8x2xf32, #tpu.memory_space<vmem>>, vector<8x2xf32>
    %c0_1 = arith.constant 0 : index
    %c0_2 = arith.constant 0 : index
    %1 = vector.load %arg2[%c0_1, %c0_2] : memref<2x896xf32, #tpu.memory_space<vmem>>, vector<2x896xf32>
    %2 = vector.extract_strided_slice %0 {offsets = [0, 0], sizes = [8, 1], strides = [1, 1]} : vector<8x2xf32> to vector<8x1xf32>
    %3 = vector.extract_strided_slice %1 {offsets = [0, 0], sizes = [1, 896], strides = [1, 1]} : vector<2x896xf32> to vector<1x896xf32>
    %4 = vector.broadcast %2 : vector<8x1xf32> to vector<8x896xf32>
    %5 = vector.broadcast %3 : vector<1x896xf32> to vector<8x896xf32>
    %6 = arith.mulf %4, %5 : vector<8x896xf32>
    %7 = vector.extract_strided_slice %0 {offsets = [0, 1], sizes = [8, 1], strides = [1, 1]} : vector<8x2xf32> to vector<8x1xf32>
    %8 = vector.extract_strided_slice %1 {offsets = [1, 0], sizes = [1, 896], strides = [1, 1]} : vector<2x896xf32> to vector<1x896xf32>
    %9 = vector.broadcast %7 : vector<8x1xf32> to vector<8x896xf32>
    %10 = vector.broadcast %8 : vector<1x896xf32> to vector<8x896xf32>
    %11 = arith.mulf %9, %10 : vector<8x896xf32>
    %12 = arith.addf %6, %11 : vector<8x896xf32>
    %c0_3 = arith.constant 0 : index
    %c0_4 = arith.constant 0 : index
    %13 = vector.load %arg3[%c0_3, %c0_4] : memref<1x896xf32, #tpu.memory_space<vmem>>, vector<1x896xf32>
    %14 = vector.broadcast %13 : vector<1x896xf32> to vector<8x896xf32>
    %15 = arith.addf %12, %14 : vector<8x896xf32>
    %cst = arith.constant 0.000000e+00 : f32
    %16 = vector.broadcast %cst : f32 to vector<8x896xf32>
    %17 = arith.maximumf %15, %16 : vector<8x896xf32>
    %18 = arith.truncf %17 : vector<8x896xf32> to vector<8x896xbf16>
    %c0_5 = arith.constant 0 : index
    %c0_6 = arith.constant 0 : index
    %19 = vector.load %arg4[%c0_5, %c0_6] : memref<896x512xbf16, #tpu.memory_space<vmem>>, vector<896x512xbf16>
    %cst_7 = arith.constant dense<0.000000e+00> : vector<8x512xf32>
    %20 = tpu.matmul %18, %19, %cst_7 {dimension_numbers = #tpu.dot_dimension_numbers<[1], [0], [0], [1], [0, 0, 1, 1], [], []>} : vector<8x896xbf16>, vector<896x512xbf16>, vector<8x512xf32> -> vector<8x512xf32>
    %c0_8 = arith.constant 0 : index
    %c0_9 = arith.constant 0 : index
    %21 = vector.load %arg5[%c0_8, %c0_9] : memref<1x512xf32, #tpu.memory_space<vmem>>, vector<1x512xf32>
    %22 = vector.broadcast %21 : vector<1x512xf32> to vector<8x512xf32>
    %23 = arith.addf %20, %22 : vector<8x512xf32>
    %cst_10 = arith.constant 0.000000e+00 : f32
    %24 = vector.broadcast %cst_10 : f32 to vector<8x512xf32>
    %25 = arith.maximumf %23, %24 : vector<8x512xf32>
    %26 = arith.truncf %25 : vector<8x512xf32> to vector<8x512xbf16>
    %c0_11 = arith.constant 0 : index
    %c0_12 = arith.constant 0 : index
    %27 = vector.load %arg6[%c0_11, %c0_12] : memref<512x128xbf16, #tpu.memory_space<vmem>>, vector<512x128xbf16>
    %cst_13 = arith.constant dense<0.000000e+00> : vector<8x128xf32>
    %28 = tpu.matmul %26, %27, %cst_13 {dimension_numbers = #tpu.dot_dimension_numbers<[1], [0], [0], [1], [0, 0, 1, 1], [], []>} : vector<8x512xbf16>, vector<512x128xbf16>, vector<8x128xf32> -> vector<8x128xf32>
    %c0_14 = arith.constant 0 : index
    %c0_15 = arith.constant 0 : index
    %29 = vector.load %arg7[%c0_14, %c0_15] : memref<1x128xf32, #tpu.memory_space<vmem>>, vector<1x128xf32>
    %30 = vector.broadcast %29 : vector<1x128xf32> to vector<8x128xf32>
    %31 = arith.addf %28, %30 : vector<8x128xf32>
    %c0_16 = arith.constant 0 : index
    %c0_17 = arith.constant 0 : index
    %32 = vector.load %arg8[%c0_16, %c0_17] : memref<8x128xf32, #tpu.memory_space<vmem>>, vector<8x128xf32>
    tpu.vector_store %arg8[%c0_16, %c0_17], %31 {strides = array<i32>} : memref<8x128xf32, #tpu.memory_space<vmem>>, vector<8x128xf32>,
    return
  }
  func.func @transform_0(%arg0: i32) -> (i32, i32) {
    %c0_i32 = arith.constant 0 : i32
    %c0_i32_0 = arith.constant 0 : i32
    return %arg0, %c0_i32 : i32, i32
  }
  func.func @transform_1(%arg0: i32) -> (i32, i32) {
    %c0_i32 = arith.constant 0 : i32
    %c0_i32_0 = arith.constant 0 : i32
    %c0_i32_1 = arith.constant 0 : i32
    return %c0_i32, %c0_i32_0 : i32, i32
  }
  func.func @transform_2(%arg0: i32) -> (i32, i32) {
    %c0_i32 = arith.constant 0 : i32
    %c0_i32_0 = arith.constant 0 : i32
    %c0_i32_1 = arith.constant 0 : i32
    return %c0_i32, %c0_i32_0 : i32, i32
  }
  func.func @transform_3(%arg0: i32) -> (i32, i32) {
    %c0_i32 = arith.constant 0 : i32
    %c0_i32_0 = arith.constant 0 : i32
    %c0_i32_1 = arith.constant 0 : i32
    return %c0_i32, %c0_i32_0 : i32, i32
  }
  func.func @transform_4(%arg0: i32) -> (i32, i32) {
    %c0_i32 = arith.constant 0 : i32
    %c0_i32_0 = arith.constant 0 : i32
    %c0_i32_1 = arith.constant 0 : i32
    return %c0_i32, %c0_i32_0 : i32, i32
  }
  func.func @transform_5(%arg0: i32) -> (i32, i32) {
    %c0_i32 = arith.constant 0 : i32
    %c0_i32_0 = arith.constant 0 : i32
    %c0_i32_1 = arith.constant 0 : i32
    return %c0_i32, %c0_i32_0 : i32, i32
  }
  func.func @transform_6(%arg0: i32) -> (i32, i32) {
    %c0_i32 = arith.constant 0 : i32
    %c0_i32_0 = arith.constant 0 : i32
    %c0_i32_1 = arith.constant 0 : i32
    return %c0_i32, %c0_i32_0 : i32, i32
  }
  func.func @transform_7(%arg0: i32) -> (i32, i32) {
    %c0_i32 = arith.constant 0 : i32
    %c0_i32_0 = arith.constant 0 : i32
    return %arg0, %c0_i32 : i32, i32
  }
}

</mosaic_0001>

<llo_original>
// kernel: tpu_custom_call.1
$region0: #{tpu_custom_call.1}
  #allocation0 [shape = 'u32[]', space=smem, size = 0x4, offset = 0x4, fixed_abs, tag = 'smem constant byte address 0x4 - core index']
  #allocation1 [shape = 'u32[144,128]{1,0:T(1,128)}', space=vmem, size = 0x12000, scoped, tag = 'internal scratch']
  %s0 = inlined_call_operand.vmem [shape: f32[8,2], index: 0, kind: input, shape index: {}]
  %s1 = inlined_call_operand.hbm [shape: f32[2,896], index: 1, kind: input, shape index: {}]
  %s2 = inlined_call_operand.vmem [shape: f32[1,896], index: 2, kind: input, shape index: {}]
  %s3 = inlined_call_operand.hbm [shape: bf16[896,512], index: 3, kind: input, shape index: {}]
  %s4 = inlined_call_operand.vmem [shape: f32[1,512], index: 4, kind: input, shape index: {}]
  %s5 = inlined_call_operand.hbm [shape: bf16[512,128], index: 5, kind: input, shape index: {}]
  %s6 = inlined_call_operand.vmem [shape: f32[1,128], index: 6, kind: input, shape index: {}]
  %s7 = inlined_call_operand.hbm [shape: f32[8,128], index: 7, kind: output, shape index: {}]
  %s8 = sld [smem:[#allocation0]]
  $region50: #{tpu_custom_call.1} parent=0
    _
  %s10 = ssub.s32 1, %s8
  %s11 = scalar_select 0, %s10, %s8
  $region1: #{tpu_custom_call.1} parent=0
    #allocation2 [shape = 'u8[7168]{0}', space=vmem, size = 0x1c00, scoped, tag = 'input window, operand 1, single buffered']
    #allocation3 [shape = 's32[1]{0}', space=sflag, size = 0x4, scoped, tag = 'scoped memory for tpu_custom_call.1']
    #allocation4 [shape = 's32[1]{0}', space=sflag, size = 0x4, scoped, tag = 'scoped memory for tpu_custom_call.1']
    #allocation5 [shape = 'u8[917504]{0}', space=vmem, size = 0xe0000, scoped, tag = 'input window, operand 3, single buffered']
    #allocation6 [shape = 's32[1]{0}', space=sflag, size = 0x4, scoped, tag = 'scoped memory for tpu_custom_call.1']
    #allocation7 [shape = 'u8[131072]{0}', space=vmem, size = 0x20000, scoped, tag = 'input window, operand 5, single buffered']
    #allocation8 [shape = 'u8[4096]{0}', space=vmem, size = 0x1000, scoped, tag = 'output window, operand 0, single buffered']
    %12 = vsyncpa [#allocation3], 0
    %13 = vsyncpa [#allocation6], 0
    %14 = vsyncpa [#allocation4], 0
    // Predicated region
    $region2: #{tpu_custom_call.1} parent=1 // pred_check
      _
    $region3: #{tpu_custom_call.1} parent=1 // pred_check_branch
      %16 = sbr.rel (0) target = $region5
    $region4: #{tpu_custom_call.1} parent=1 // pred_region
      _
    $region5: #{tpu_custom_call.1} parent=1 // pred_fallthru
      _
    // Predicated region
    $region6: #{tpu_custom_call.1} parent=1 // pred_check
      _
    $region7: #{tpu_custom_call.1} parent=1 // pred_check_branch
      %18 = sbr.rel (0) target = $region9
    $region8: #{tpu_custom_call.1} parent=1 // pred_region
      %s20 = ssub.s32 224, 224
      %21 = vsyncadd [#allocation3], %s20
      %s23 = sshll.u32 [#allocation2], 4
      %s24 = int_to_ptr.vmem [resolvable:$true] %s23
      %26 = dma.hbm_to_vmem [thread:$0]  %s1, 224, %s24, [#allocation3]
    $region9: #{tpu_custom_call.1} parent=1 // pred_fallthru
      _
    // Predicated region
    $region10: #{tpu_custom_call.1} parent=1 // pred_check
      _
    $region11: #{tpu_custom_call.1} parent=1 // pred_check_branch
      %28 = sbr.rel (0) target = $region13
    $region12: #{tpu_custom_call.1} parent=1 // pred_region
      _
    $region13: #{tpu_custom_call.1} parent=1 // pred_fallthru
      _
    // Predicated region
    $region14: #{tpu_custom_call.1} parent=1 // pred_check
      _
    $region15: #{tpu_custom_call.1} parent=1 // pred_check_branch
      %30 = sbr.rel (0) target = $region17
    $region16: #{tpu_custom_call.1} parent=1 // pred_region
      %s32 = ssub.s32 28672, 28672
      %33 = vsyncadd [#allocation6], %s32
      %s34 = sshll.u32 [#allocation5], 4
      %s35 = int_to_ptr.vmem [resolvable:$true] %s34
      %40 = dma.hbm_to_vmem [thread:$0]  %s3, 28672, %s35, [#allocation6], 256, 256, 16
    $region17: #{tpu_custom_call.1} parent=1 // pred_fallthru
      _
    // Predicated region
    $region18: #{tpu_custom_call.1} parent=1 // pred_check
      _
    $region19: #{tpu_custom_call.1} parent=1 // pred_check_branch
      %42 = sbr.rel (0) target = $region21
    $region20: #{tpu_custom_call.1} parent=1 // pred_region
      _
    $region21: #{tpu_custom_call.1} parent=1 // pred_fallthru
      _
    // Predicated region
    $region22: #{tpu_custom_call.1} parent=1 // pred_check
      _
    $region23: #{tpu_custom_call.1} parent=1 // pred_check_branch
      %44 = sbr.rel (0) target = $region25
    $region24: #{tpu_custom_call.1} parent=1 // pred_region
      %s46 = ssub.s32 4096, 4096
      %47 = vsyncadd [#allocation6], %s46
      %s48 = sshll.u32 [#allocation7], 4
      %s49 = int_to_ptr.vmem [resolvable:$true] %s48
      %54 = dma.hbm_to_vmem [thread:$0]  %s5, 4096, %s49, [#allocation6], 64, 64, 4
    $region25: #{tpu_custom_call.1} parent=1 // pred_fallthru
      _
    // Predicated region
    $region26: #{tpu_custom_call.1} parent=1 // pred_check
      _
    $region27: #{tpu_custom_call.1} parent=1 // pred_check_branch
      %56 = sbr.rel (0) target = $region29
    $region28: #{tpu_custom_call.1} parent=1 // pred_region
      _
    $region29: #{tpu_custom_call.1} parent=1 // pred_fallthru
      _
    // Predicated region
    $region30: #{tpu_custom_call.1} parent=1 // pred_check
      _
    $region31: #{tpu_custom_call.1} parent=1 // pred_check_branch
      %58 = sbr.rel (0) target = $region33
    $region32: #{tpu_custom_call.1} parent=1 // pred_region
      %59 = dma.done [#allocation3], 224
    $region33: #{tpu_custom_call.1} parent=1 // pred_fallthru
      _
    // Predicated region
    $region34: #{tpu_custom_call.1} parent=1 // pred_check
      _
    $region35: #{tpu_custom_call.1} parent=1 // pred_check_branch
      %61 = sbr.rel (0) target = $region37
    $region36: #{tpu_custom_call.1} parent=1 // pred_region
      %62 = dma.done [#allocation6], 28672
    $region37: #{tpu_custom_call.1} parent=1 // pred_fallthru
      _
    // Predicated region
    $region38: #{tpu_custom_call.1} parent=1 // pred_check
      _
    $region39: #{tpu_custom_call.1} parent=1 // pred_check_branch
      %64 = sbr.rel (0) target = $region41
    $region40: #{tpu_custom_call.1} parent=1 // pred_region
      %65 = dma.done [#allocation6], 4096
    $region41: #{tpu_custom_call.1} parent=1 // pred_fallthru
      _
    %v67 = vld [vmem:[%s0] sm:$0xff]
    %v68 = vld [vmem:[#allocation2] sm:$0xff]
    %v69 = vld [vmem:[#allocation2 + $0x8] sm:$0x3f]
    %71 = vset.pattern.permute.xlu0 0
    %72 = vperm.xlu0 %71, %v67
    %v73 = vpop.permute.xlu0 %72
    %v77 = vlaneseq
    %v78 = vshrl.u32 %v77, 7
    %v79 = vsub.s32 0, %v78
    %v80 = vrot.slane %v68, %v79
    %v81 = vlaneseq
    %v82 = vshrl.u32 %v81, 7
    %v83 = vsub.s32 2, %v82
    %v84 = vrot.slane %v68, %v83
    %v85 = vlaneseq
    %v86 = vshrl.u32 %v85, 7
    %v87 = vsub.s32 4, %v86
    %v88 = vrot.slane %v68, %v87
    %v89 = vlaneseq
    %v90 = vshrl.u32 %v89, 7
    %v91 = vsub.s32 6, %v90
    %v92 = vrot.slane %v68, %v91
    %v93 = vlaneseq
    %v94 = vshrl.u32 %v93, 7
    %v95 = vsub.s32 0, %v94
    %v96 = vrot.slane %v69, %v95
    %v97 = vlaneseq
    %v98 = vshrl.u32 %v97, 7
    %v99 = vsub.s32 2, %v98
    %v100 = vrot.slane %v69, %v99
    %v101 = vlaneseq
    %v102 = vshrl.u32 %v101, 7
    %v103 = vsub.s32 4, %v102
    %v104 = vrot.slane %v69, %v103
    %v112 = vlaneseq
    %v113 = vshrl.u32 %v112, 7
    %v114 = vsub.s32 0, %v113
    %v115 = vrot.slane %v80, %v114
    %v116 = vlaneseq
    %v117 = vshrl.u32 %v116, 7
    %v118 = vsub.s32 0, %v117
    %v119 = vrot.slane %v84, %v118
    %v120 = vlaneseq
    %v121 = vshrl.u32 %v120, 7
    %v122 = vsub.s32 0, %v121
    %v123 = vrot.slane %v88, %v122
    %v124 = vlaneseq
    %v125 = vshrl.u32 %v124, 7
    %v126 = vsub.s32 0, %v125
    %v127 = vrot.slane %v92, %v126
    %v128 = vlaneseq
    %v129 = vshrl.u32 %v128, 7
    %v130 = vsub.s32 0, %v129
    %v131 = vrot.slane %v96, %v130
    %v132 = vlaneseq
    %v133 = vshrl.u32 %v132, 7
    %v134 = vsub.s32 0, %v133
    %v135 = vrot.slane %v100, %v134
    %v136 = vlaneseq
    %v137 = vshrl.u32 %v136, 7
    %v138 = vsub.s32 0, %v137
    %v139 = vrot.slane %v104, %v138
    %v140 = vmul.f32 %v73, %v115
    %v141 = vmul.f32 %v73, %v119
    %v142 = vmul.f32 %v73, %v123
    %v143 = vmul.f32 %v73, %v127
    %v144 = vmul.f32 %v73, %v131
    %v145 = vmul.f32 %v73, %v135
    %v146 = vmul.f32 %v73, %v139
    %147 = vset.pattern.permute.xlu0 1
    %148 = vperm.xlu0 %147, %v67
    %v149 = vpop.permute.xlu0 %148
    %v151 = vlaneseq
    %v152 = vshrl.u32 %v151, 7
    %v153 = vsub.s32 1, %v152
    %v154 = vrot.slane %v68, %v153
    %v155 = vlaneseq
    %v156 = vshrl.u32 %v155, 7
    %v157 = vsub.s32 3, %v156
    %v158 = vrot.slane %v68, %v157
    %v159 = vlaneseq
    %v160 = vshrl.u32 %v159, 7
    %v161 = vsub.s32 5, %v160
    %v162 = vrot.slane %v68, %v161
    %v163 = vlaneseq
    %v164 = vshrl.u32 %v163, 7
    %v165 = vsub.s32 7, %v164
    %v166 = vrot.slane %v68, %v165
    %v167 = vlaneseq
    %v168 = vshrl.u32 %v167, 7
    %v169 = vsub.s32 1, %v168
    %v170 = vrot.slane %v69, %v169
    %v171 = vlaneseq
    %v172 = vshrl.u32 %v171, 7
    %v173 = vsub.s32 3, %v172
    %v174 = vrot.slane %v69, %v173
    %v175 = vlaneseq
    %v176 = vshrl.u32 %v175, 7
    %v177 = vsub.s32 5, %v176
    %v178 = vrot.slane %v69, %v177
    %v186 = vlaneseq
    %v187 = vshrl.u32 %v186, 7
    %v188 = vsub.s32 1, %v187
    %v189 = vrot.slane %v154, %v188
    %v190 = vlaneseq
    %v191 = vshrl.u32 %v190, 7
    %v192 = vsub.s32 1, %v191
    %v193 = vrot.slane %v158, %v192
    %v194 = vlaneseq
    %v195 = vshrl.u32 %v194, 7
    %v196 = vsub.s32 1, %v195
    %v197 = vrot.slane %v162, %v196
    %v198 = vlaneseq
    %v199 = vshrl.u32 %v198, 7
    %v200 = vsub.s32 1, %v199
    %v201 = vrot.slane %v166, %v200
    %v202 = vlaneseq
    %v203 = vshrl.u32 %v202, 7
    %v204 = vsub.s32 1, %v203
    %v205 = vrot.slane %v170, %v204
    %v206 = vlaneseq
    %v207 = vshrl.u32 %v206, 7
    %v208 = vsub.s32 1, %v207
    %v209 = vrot.slane %v174, %v208
    %v210 = vlaneseq
    %v211 = vshrl.u32 %v210, 7
    %v212 = vsub.s32 1, %v211
    %v213 = vrot.slane %v178, %v212
    %v214 = vmul.f32 %v149, %v189
    %v215 = vmul.f32 %v149, %v193
    %v216 = vmul.f32 %v149, %v197
    %v217 = vmul.f32 %v149, %v201
    %v218 = vmul.f32 %v149, %v205
    %v219 = vmul.f32 %v149, %v209
    %v220 = vmul.f32 %v149, %v213
    %v221 = vadd.f32 %v140, %v214
    %v222 = vadd.f32 %v141, %v215
    %v223 = vadd.f32 %v142, %v216
    %v224 = vadd.f32 %v143, %v217
    %v225 = vadd.f32 %v144, %v218
    %v226 = vadd.f32 %v145, %v219
    %v227 = vadd.f32 %v146, %v220
    %v228 = vld [vmem:[%s2] sm:$0xff]
    %v230 = vlaneseq
    %v231 = vshrl.u32 %v230, 7
    %v232 = vsub.s32 0, %v231
    %v233 = vrot.slane %v228, %v232
    %v234 = vlaneseq
    %v235 = vshrl.u32 %v234, 7
    %v236 = vsub.s32 1, %v235
    %v237 = vrot.slane %v228, %v236
    %v238 = vlaneseq
    %v239 = vshrl.u32 %v238, 7
    %v240 = vsub.s32 2, %v239
    %v241 = vrot.slane %v228, %v240
    %v242 = vlaneseq
    %v243 = vshrl.u32 %v242, 7
    %v244 = vsub.s32 3, %v243
    %v245 = vrot.slane %v228, %v244
    %v246 = vlaneseq
    %v247 = vshrl.u32 %v246, 7
    %v248 = vsub.s32 4, %v247
    %v249 = vrot.slane %v228, %v248
    %v250 = vlaneseq
    %v251 = vshrl.u32 %v250, 7
    %v252 = vsub.s32 5, %v251
    %v253 = vrot.slane %v228, %v252
    %v254 = vlaneseq
    %v255 = vshrl.u32 %v254, 7
    %v256 = vsub.s32 6, %v255
    %v257 = vrot.slane %v228, %v256
    %v265 = vadd.f32 %v221, %v233
    %v266 = vadd.f32 %v222, %v237
    %v267 = vadd.f32 %v223, %v241
    %v268 = vadd.f32 %v224, %v245
    %v269 = vadd.f32 %v225, %v249
    %v270 = vadd.f32 %v226, %v253
    %v271 = vadd.f32 %v227, %v257
    %v272 = vmax.f32 %v265, 0.0
    %v273 = vmax.f32 %v266, 0.0
    %v274 = vmax.f32 %v267, 0.0
    %v275 = vmax.f32 %v268, 0.0
    %v276 = vmax.f32 %v269, 0.0
    %v277 = vmax.f32 %v270, 0.0
    %v278 = vmax.f32 %v271, 0.0
    %v279 = vpack.c.bf16 %v272, %v272
    %v280 = vpack.c.bf16 %v273, %v273
    %v281 = vpack.c.bf16 %v274, %v274
    %v282 = vpack.c.bf16 %v275, %v275
    %v283 = vpack.c.bf16 %v276, %v276
    %v284 = vpack.c.bf16 %v277, %v277
    %v285 = vpack.c.bf16 %v278, %v278
    %v286 = vld [vmem:[#allocation5] sm:$0xff]
    %v287 = vld [vmem:[#allocation5 + $0x8] sm:$0xff]
    %v288 = vld [vmem:[#allocation5 + $0x10] sm:$0xff]
    %v289 = vld [vmem:[#allocation5 + $0x18] sm:$0xff]
    %v290 = vld [vmem:[#allocation5 + $0x20] sm:$0xff]
    %v291 = vld [vmem:[#allocation5 + $0x28] sm:$0xff]
    %v292 = vld [vmem:[#allocation5 + $0x30] sm:$0xff]
    %v293 = vld [vmem:[#allocation5 + $0x38] sm:$0xff]
    %v294 = vld [vmem:[#allocation5 + $0x40] sm:$0xff]
    %v295 = vld [vmem:[#allocation5 + $0x48] sm:$0xff]
    %v296 = vld [vmem:[#allocation5 + $0x50] sm:$0xff]
    %v297 = vld [vmem:[#allocation5 + $0x58] sm:$0xff]
    %v298 = vld [vmem:[#allocation5 + $0x60] sm:$0xff]
    %v299 = vld [vmem:[#allocation5 + $0x68] sm:$0xff]
    %v300 = vld [vmem:[#allocation5 + $0x70] sm:$0xff]
    %v301 = vld [vmem:[#allocation5 + $0x78] sm:$0xff]
    %v302 = vld [vmem:[#allocation5 + $0x80] sm:$0xff]
    %v303 = vld [vmem:[#allocation5 + $0x88] sm:$0xff]
    %v304 = vld [vmem:[#allocation5 + $0x90] sm:$0xff]
    %v305 = vld [vmem:[#allocation5 + $0x98] sm:$0xff]
    %v306 = vld [vmem:[#allocation5 + $0xa0] sm:$0xff]
    %v307 = vld [vmem:[#allocation5 + $0xa8] sm:$0xff]
    %v308 = vld [vmem:[#allocation5 + $0xb0] sm:$0xff]
    %v309 = vld [vmem:[#allocation5 + $0xb8] sm:$0xff]
    %v310 = vld [vmem:[#allocation5 + $0xc0] sm:$0xff]
    %v311 = vld [vmem:[#allocation5 + $0xc8] sm:$0xff]
    %v312 = vld [vmem:[#allocation5 + $0xd0] sm:$0xff]
    %v313 = vld [vmem:[#allocation5 + $0xd8] sm:$0xff]
    %v314 = vld [vmem:[#allocation5 + $0xe0] sm:$0xff]
    %v315 = vld [vmem:[#allocation5 + $0xe8] sm:$0xff]
    %v316 = vld [vmem:[#allocation5 + $0xf0] sm:$0xff]
    %v317 = vld [vmem:[#allocation5 + $0xf8] sm:$0xff]
    %v318 = vld [vmem:[#allocation5 + $0x100] sm:$0xff]
    %v319 = vld [vmem:[#allocation5 + $0x108] sm:$0xff]
    %v320 = vld [vmem:[#allocation5 + $0x110] sm:$0xff]
    %v321 = vld [vmem:[#allocation5 + $0x118] sm:$0xff]
    %v322 = vld [vmem:[#allocation5 + $0x120] sm:$0xff]
    %v323 = vld [vmem:[#allocation5 + $0x128] sm:$0xff]
    %v324 = vld [vmem:[#allocation5 + $0x130] sm:$0xff]
    %v325 = vld [vmem:[#allocation5 + $0x138] sm:$0xff]
    %v326 = vld [vmem:[#allocation5 + $0x140] sm:$0xff]
    %v327 = vld [vmem:[#allocation5 + $0x148] sm:$0xff]
    %v328 = vld [vmem:[#allocation5 + $0x150] sm:$0xff]
    %v329 = vld [vmem:[#allocation5 + $0x158] sm:$0xff]
    %v330 = vld [vmem:[#allocation5 + $0x160] sm:$0xff]
    %v331 = vld [vmem:[#allocation5 + $0x168] sm:$0xff]
    %v332 = vld [vmem:[#allocation5 + $0x170] sm:$0xff]
    %v333 = vld [vmem:[#allocation5 + $0x178] sm:$0xff]
    %v334 = vld [vmem:[#allocation5 + $0x180] sm:$0xff]
    %v335 = vld [vmem:[#allocation5 + $0x188] sm:$0xff]
    %v336 = vld [vmem:[#allocation5 + $0x190] sm:$0xff]
    %v337 = vld [vmem:[#allocation5 + $0x198] sm:$0xff]
    %v338 = vld [vmem:[#allocation5 + $0x1a0] sm:$0xff]
    %v339 = vld [vmem:[#allocation5 + $0x1a8] sm:$0xff]
    %v340 = vld [vmem:[#allocation5 + $0x1b0] sm:$0xff]
    %v341 = vld [vmem:[#allocation5 + $0x1b8] sm:$0xff]
    %v342 = vld [vmem:[#allocation5 + $0x1c0] sm:$0xff]
    %v343 = vld [vmem:[#allocation5 + $0x1c8] sm:$0xff]
    %v344 = vld [vmem:[#allocation5 + $0x1d0] sm:$0xff]
    %v345 = vld [vmem:[#allocation5 + $0x1d8] sm:$0xff]
    %v346 = vld [vmem:[#allocation5 + $0x1e0] sm:$0xff]
    %v347 = vld [vmem:[#allocation5 + $0x1e8] sm:$0xff]
    %v348 = vld [vmem:[#allocation5 + $0x1f0] sm:$0xff]
    %v349 = vld [vmem:[#allocation5 + $0x1f8] sm:$0xff]
    %v350 = vld [vmem:[#allocation5 + $0x200] sm:$0xff]
    %v351 = vld [vmem:[#allocation5 + $0x208] sm:$0xff]
    %v352 = vld [vmem:[#allocation5 + $0x210] sm:$0xff]
    %v353 = vld [vmem:[#allocation5 + $0x218] sm:$0xff]
    %v354 = vld [vmem:[#allocation5 + $0x220] sm:$0xff]
    %v355 = vld [vmem:[#allocation5 + $0x228] sm:$0xff]
    %v356 = vld [vmem:[#allocation5 + $0x230] sm:$0xff]
    %v357 = vld [vmem:[#allocation5 + $0x238] sm:$0xff]
    %v358 = vld [vmem:[#allocation5 + $0x240] sm:$0xff]
    %v359 = vld [vmem:[#allocation5 + $0x248] sm:$0xff]
    %v360 = vld [vmem:[#allocation5 + $0x250] sm:$0xff]
    %v361 = vld [vmem:[#allocation5 + $0x258] sm:$0xff]
    %v362 = vld [vmem:[#allocation5 + $0x260] sm:$0xff]
    %v363 = vld [vmem:[#allocation5 + $0x268] sm:$0xff]
    %v364 = vld [vmem:[#allocation5 + $0x270] sm:$0xff]
    %v365 = vld [vmem:[#allocation5 + $0x278] sm:$0xff]
    %v366 = vld [vmem:[#allocation5 + $0x280] sm:$0xff]
    %v367 = vld [vmem:[#allocation5 + $0x288] sm:$0xff]
    %v368 = vld [vmem:[#allocation5 + $0x290] sm:$0xff]
    %v369 = vld [vmem:[#allocation5 + $0x298] sm:$0xff]
    %v370 = vld [vmem:[#allocation5 + $0x2a0] sm:$0xff]
    %v371 = vld [vmem:[#allocation5 + $0x2a8] sm:$0xff]
    %v372 = vld [vmem:[#allocation5 + $0x2b0] sm:$0xff]
    %v373 = vld [vmem:[#allocation5 + $0x2b8] sm:$0xff]
    %v374 = vld [vmem:[#allocation5 + $0x2c0] sm:$0xff]
    %v375 = vld [vmem:[#allocation5 + $0x2c8] sm:$0xff]
    %v376 = vld [vmem:[#allocation5 + $0x2d0] sm:$0xff]
    %v377 = vld [vmem:[#allocation5 + $0x2d8] sm:$0xff]
    %v378 = vld [vmem:[#allocation5 + $0x2e0] sm:$0xff]
    %v379 = vld [vmem:[#allocation5 + $0x2e8] sm:$0xff]
    %v380 = vld [vmem:[#allocation5 + $0x2f0] sm:$0xff]
    %v381 = vld [vmem:[#allocation5 + $0x2f8] sm:$0xff]
    %v382 = vld [vmem:[#allocation5 + $0x300] sm:$0xff]
    %v383 = vld [vmem:[#allocation5 + $0x308] sm:$0xff]
    %v384 = vld [vmem:[#allocation5 + $0x310] sm:$0xff]
    %v385 = vld [vmem:[#allocation5 + $0x318] sm:$0xff]
    %v386 = vld [vmem:[#allocation5 + $0x320] sm:$0xff]
    %v387 = vld [vmem:[#allocation5 + $0x328] sm:$0xff]
    %v388 = vld [vmem:[#allocation5 + $0x330] sm:$0xff]
    %v389 = vld [vmem:[#allocation5 + $0x338] sm:$0xff]
    %v390 = vld [vmem:[#allocation5 + $0x340] sm:$0xff]
    %v391 = vld [vmem:[#allocation5 + $0x348] sm:$0xff]
    %v392 = vld [vmem:[#allocation5 + $0x350] sm:$0xff]
    %v393 = vld [vmem:[#allocation5 + $0x358] sm:$0xff]
    %v394 = vld [vmem:[#allocation5 + $0x360] sm:$0xff]
    %v395 = vld [vmem:[#allocation5 + $0x368] sm:$0xff]
    %v396 = vld [vmem:[#allocation5 + $0x370] sm:$0xff]
    %v397 = vld [vmem:[#allocation5 + $0x378] sm:$0xff]
    %v398 = vld [vmem:[#allocation5 + $0x380] sm:$0xff]
    %v399 = vld [vmem:[#allocation5 + $0x388] sm:$0xff]
    %v400 = vld [vmem:[#allocation5 + $0x390] sm:$0xff]
    %v401 = vld [vmem:[#allocation5 + $0x398] sm:$0xff]
    %v402 = vld [vmem:[#allocation5 + $0x3a0] sm:$0xff]
    %v403 = vld [vmem:[#allocation5 + $0x3a8] sm:$0xff]
    %v404 = vld [vmem:[#allocation5 + $0x3b0] sm:$0xff]
    %v405 = vld [vmem:[#allocation5 + $0x3b8] sm:$0xff]
    %v406 = vld [vmem:[#allocation5 + $0x3c0] sm:$0xff]
    %v407 = vld [vmem:[#allocation5 + $0x3c8] sm:$0xff]
    %v408 = vld [vmem:[#allocation5 + $0x3d0] sm:$0xff]
    %v409 = vld [vmem:[#allocation5 + $0x3d8] sm:$0xff]
    %v410 = vld [vmem:[#allocation5 + $0x3e0] sm:$0xff]
    %v411 = vld [vmem:[#allocation5 + $0x3e8] sm:$0xff]
    %v412 = vld [vmem:[#allocation5 + $0x3f0] sm:$0xff]
    %v413 = vld [vmem:[#allocation5 + $0x3f8] sm:$0xff]
    %v414 = vld [vmem:[#allocation5 + $0x400] sm:$0xff]
    %v415 = vld [vmem:[#allocation5 + $0x408] sm:$0xff]
    %v416 = vld [vmem:[#allocation5 + $0x410] sm:$0xff]
    %v417 = vld [vmem:[#allocation5 + $0x418] sm:$0xff]
    %v418 = vld [vmem:[#allocation5 + $0x420] sm:$0xff]
    %v419 = vld [vmem:[#allocation5 + $0x428] sm:$0xff]
    %v420 = vld [vmem:[#allocation5 + $0x430] sm:$0xff]
    %v421 = vld [vmem:[#allocation5 + $0x438] sm:$0xff]
    %v422 = vld [vmem:[#allocation5 + $0x440] sm:$0xff]
    %v423 = vld [vmem:[#allocation5 + $0x448] sm:$0xff]
    %v424 = vld [vmem:[#allocation5 + $0x450] sm:$0xff]
    %v425 = vld [vmem:[#allocation5 + $0x458] sm:$0xff]
    %v426 = vld [vmem:[#allocation5 + $0x460] sm:$0xff]
    %v427 = vld [vmem:[#allocation5 + $0x468] sm:$0xff]
    %v428 = vld [vmem:[#allocation5 + $0x470] sm:$0xff]
    %v429 = vld [vmem:[#allocation5 + $0x478] sm:$0xff]
    %v430 = vld [vmem:[#allocation5 + $0x480] sm:$0xff]
    %v431 = vld [vmem:[#allocation5 + $0x488] sm:$0xff]
    %v432 = vld [vmem:[#allocation5 + $0x490] sm:$0xff]
    %v433 = vld [vmem:[#allocation5 + $0x498] sm:$0xff]
    %v434 = vld [vmem:[#allocation5 + $0x4a0] sm:$0xff]
    %v435 = vld [vmem:[#allocation5 + $0x4a8] sm:$0xff]
    %v436 = vld [vmem:[#allocation5 + $0x4b0] sm:$0xff]
    %v437 = vld [vmem:[#allocation5 + $0x4b8] sm:$0xff]
    %v438 = vld [vmem:[#allocation5 + $0x4c0] sm:$0xff]
    %v439 = vld [vmem:[#allocation5 + $0x4c8] sm:$0xff]
    %v440 = vld [vmem:[#allocation5 + $0x4d0] sm:$0xff]
    %v441 = vld [vmem:[#allocation5 + $0x4d8] sm:$0xff]
    %v442 = vld [vmem:[#allocation5 + $0x4e0] sm:$0xff]
    %v443 = vld [vmem:[#allocation5 + $0x4e8] sm:$0xff]
    %v444 = vld [vmem:[#allocation5 + $0x4f0] sm:$0xff]
    %v445 = vld [vmem:[#allocation5 + $0x4f8] sm:$0xff]
    %v446 = vld [vmem:[#allocation5 + $0x500] sm:$0xff]
    %v447 = vld [vmem:[#allocation5 + $0x508] sm:$0xff]
    %v448 = vld [vmem:[#allocation5 + $0x510] sm:$0xff]
    %v449 = vld [vmem:[#allocation5 + $0x518] sm:$0xff]
    %v450 = vld [vmem:[#allocation5 + $0x520] sm:$0xff]
    %v451 = vld [vmem:[#allocation5 + $0x528] sm:$0xff]
    %v452 = vld [vmem:[#allocation5 + $0x530] sm:$0xff]
    %v453 = vld [vmem:[#allocation5 + $0x538] sm:$0xff]
    %v454 = vld [vmem:[#allocation5 + $0x540] sm:$0xff]
    %v455 = vld [vmem:[#allocation5 + $0x548] sm:$0xff]
    %v456 = vld [vmem:[#allocation5 + $0x550] sm:$0xff]
    %v457 = vld [vmem:[#allocation5 + $0x558] sm:$0xff]
    %v458 = vld [vmem:[#allocation5 + $0x560] sm:$0xff]
    %v459 = vld [vmem:[#allocation5 + $0x568] sm:$0xff]
    %v460 = vld [vmem:[#allocation5 + $0x570] sm:$0xff]
    %v461 = vld [vmem:[#allocation5 + $0x578] sm:$0xff]
    %v462 = vld [vmem:[#allocation5 + $0x580] sm:$0xff]
    %v463 = vld [vmem:[#allocation5 + $0x588] sm:$0xff]
    %v464 = vld [vmem:[#allocation5 + $0x590] sm:$0xff]
    %v465 = vld [vmem:[#allocation5 + $0x598] sm:$0xff]
    %v466 = vld [vmem:[#allocation5 + $0x5a0] sm:$0xff]
    %v467 = vld [vmem:[#allocation5 + $0x5a8] sm:$0xff]
    %v468 = vld [vmem:[#allocation5 + $0x5b0] sm:$0xff]
    %v469 = vld [vmem:[#allocation5 + $0x5b8] sm:$0xff]
    %v470 = vld [vmem:[#allocation5 + $0x5c0] sm:$0xff]
    %v471 = vld [vmem:[#allocation5 + $0x5c8] sm:$0xff]
    %v472 = vld [vmem:[#allocation5 + $0x5d0] sm:$0xff]
    %v473 = vld [vmem:[#allocation5 + $0x5d8] sm:$0xff]
    %v474 = vld [vmem:[#allocation5 + $0x5e0] sm:$0xff]
    %v475 = vld [vmem:[#allocation5 + $0x5e8] sm:$0xff]
    %v476 = vld [vmem:[#allocation5 + $0x5f0] sm:$0xff]
    %v477 = vld [vmem:[#allocation5 + $0x5f8] sm:$0xff]
    %v478 = vld [vmem:[#allocation5 + $0x600] sm:$0xff]
    %v479 = vld [vmem:[#allocation5 + $0x608] sm:$0xff]
    %v480 = vld [vmem:[#allocation5 + $0x610] sm:$0xff]
    %v481 = vld [vmem:[#allocation5 + $0x618] sm:$0xff]
    %v482 = vld [vmem:[#allocation5 + $0x620] sm:$0xff]
    %v483 = vld [vmem:[#allocation5 + $0x628] sm:$0xff]
    %v484 = vld [vmem:[#allocation5 + $0x630] sm:$0xff]
    %v485 = vld [vmem:[#allocation5 + $0x638] sm:$0xff]
    %v486 = vld [vmem:[#allocation5 + $0x640] sm:$0xff]
    %v487 = vld [vmem:[#allocation5 + $0x648] sm:$0xff]
    %v488 = vld [vmem:[#allocation5 + $0x650] sm:$0xff]
    %v489 = vld [vmem:[#allocation5 + $0x658] sm:$0xff]
    %v490 = vld [vmem:[#allocation5 + $0x660] sm:$0xff]
    %v491 = vld [vmem:[#allocation5 + $0x668] sm:$0xff]
    %v492 = vld [vmem:[#allocation5 + $0x670] sm:$0xff]
    %v493 = vld [vmem:[#allocation5 + $0x678] sm:$0xff]
    %v494 = vld [vmem:[#allocation5 + $0x680] sm:$0xff]
    %v495 = vld [vmem:[#allocation5 + $0x688] sm:$0xff]
    %v496 = vld [vmem:[#allocation5 + $0x690] sm:$0xff]
    %v497 = vld [vmem:[#allocation5 + $0x698] sm:$0xff]
    %v498 = vld [vmem:[#allocation5 + $0x6a0] sm:$0xff]
    %v499 = vld [vmem:[#allocation5 + $0x6a8] sm:$0xff]
    %v500 = vld [vmem:[#allocation5 + $0x6b0] sm:$0xff]
    %v501 = vld [vmem:[#allocation5 + $0x6b8] sm:$0xff]
    %v502 = vld [vmem:[#allocation5 + $0x6c0] sm:$0xff]
    %v503 = vld [vmem:[#allocation5 + $0x6c8] sm:$0xff]
    %v504 = vld [vmem:[#allocation5 + $0x6d0] sm:$0xff]
    %v505 = vld [vmem:[#allocation5 + $0x6d8] sm:$0xff]
    %v506 = vld [vmem:[#allocation5 + $0x6e0] sm:$0xff]
    %v507 = vld [vmem:[#allocation5 + $0x6e8] sm:$0xff]
    %v508 = vld [vmem:[#allocation5 + $0x6f0] sm:$0xff]
    %v509 = vld [vmem:[#allocation5 + $0x6f8] sm:$0xff]
    %v510 = vld [vmem:[%s4] sm:$0xf]
    %v512 = vlaneseq
    %v513 = vshrl.u32 %v512, 7
    %v514 = vsub.s32 0, %v513
    %v515 = vrot.slane %v510, %v514
    %v516 = vlaneseq
    %v517 = vshrl.u32 %v516, 7
    %v518 = vsub.s32 1, %v517
    %v519 = vrot.slane %v510, %v518
    %v520 = vlaneseq
    %v521 = vshrl.u32 %v520, 7
    %v522 = vsub.s32 2, %v521
    %v523 = vrot.slane %v510, %v522
    %v524 = vlaneseq
    %v525 = vshrl.u32 %v524, 7
    %v526 = vsub.s32 3, %v525
    %v527 = vrot.slane %v510, %v526
    %v756 = vunpack.c.l.b16 %v286
    %v757 = vunpack.c.h.b16 %v286
    %v758 = vunpack.c.l.b16 %v287
    %v759 = vunpack.c.h.b16 %v287
    %v760 = vunpack.c.l.b16 %v288
    %v761 = vunpack.c.h.b16 %v288
    %v762 = vunpack.c.l.b16 %v289
    %v763 = vunpack.c.h.b16 %v289
    %v764 = vunpack.c.l.b16 %v290
    %v765 = vunpack.c.h.b16 %v290
    %v766 = vunpack.c.l.b16 %v291
    %v767 = vunpack.c.h.b16 %v291
    %v768 = vunpack.c.l.b16 %v292
    %v769 = vunpack.c.h.b16 %v292
    %v770 = vunpack.c.l.b16 %v293
    %v771 = vunpack.c.h.b16 %v293
    %v772 = vunpack.c.l.b16 %v294
    %v773 = vunpack.c.h.b16 %v294
    %v774 = vunpack.c.l.b16 %v295
    %v775 = vunpack.c.h.b16 %v295
    %v776 = vunpack.c.l.b16 %v296
    %v777 = vunpack.c.h.b16 %v296
    %v778 = vunpack.c.l.b16 %v297
    %v779 = vunpack.c.h.b16 %v297
    %v780 = vunpack.c.l.b16 %v298
    %v781 = vunpack.c.h.b16 %v298
    %v782 = vunpack.c.l.b16 %v299
    %v783 = vunpack.c.h.b16 %v299
    %v784 = vunpack.c.l.b16 %v300
    %v785 = vunpack.c.h.b16 %v300
    %v786 = vunpack.c.l.b16 %v301
    %v787 = vunpack.c.h.b16 %v301
    %v788 = vunpack.c.l.b16 %v302
    %v789 = vunpack.c.h.b16 %v302
    %v790 = vunpack.c.l.b16 %v303
    %v791 = vunpack.c.h.b16 %v303
    %v792 = vunpack.c.l.b16 %v304
    %v793 = vunpack.c.h.b16 %v304
    %v794 = vunpack.c.l.b16 %v305
    %v795 = vunpack.c.h.b16 %v305
    %v796 = vunpack.c.l.b16 %v306
    %v797 = vunpack.c.h.b16 %v306
    %v798 = vunpack.c.l.b16 %v307
    %v799 = vunpack.c.h.b16 %v307
    %v800 = vunpack.c.l.b16 %v308
    %v801 = vunpack.c.h.b16 %v308
    %v802 = vunpack.c.l.b16 %v309
    %v803 = vunpack.c.h.b16 %v309
    %v804 = vunpack.c.l.b16 %v310
    %v805 = vunpack.c.h.b16 %v310
    %v806 = vunpack.c.l.b16 %v311
    %v807 = vunpack.c.h.b16 %v311
    %v808 = vunpack.c.l.b16 %v312
    %v809 = vunpack.c.h.b16 %v312
    %v810 = vunpack.c.l.b16 %v313
    %v811 = vunpack.c.h.b16 %v313
    %v812 = vunpack.c.l.b16 %v314
    %v813 = vunpack.c.h.b16 %v314
    %v814 = vunpack.c.l.b16 %v315
    %v815 = vunpack.c.h.b16 %v315
    %v816 = vunpack.c.l.b16 %v316
    %v817 = vunpack.c.h.b16 %v316
    %v818 = vunpack.c.l.b16 %v317
    %v819 = vunpack.c.h.b16 %v317
    %v820 = vunpack.c.l.b16 %v318
    %v821 = vunpack.c.h.b16 %v318
    %v822 = vunpack.c.l.b16 %v319
    %v823 = vunpack.c.h.b16 %v319
    %v824 = vunpack.c.l.b16 %v320
    %v825 = vunpack.c.h.b16 %v320
    %v826 = vunpack.c.l.b16 %v321
    %v827 = vunpack.c.h.b16 %v321
    %v828 = vunpack.c.l.b16 %v322
    %v829 = vunpack.c.h.b16 %v322
    %v830 = vunpack.c.l.b16 %v323
    %v831 = vunpack.c.h.b16 %v323
    %v832 = vunpack.c.l.b16 %v324
    %v833 = vunpack.c.h.b16 %v324
    %v834 = vunpack.c.l.b16 %v325
    %v835 = vunpack.c.h.b16 %v325
    %v836 = vunpack.c.l.b16 %v326
    %v837 = vunpack.c.h.b16 %v326
    %v838 = vunpack.c.l.b16 %v327
    %v839 = vunpack.c.h.b16 %v327
    %v840 = vunpack.c.l.b16 %v328
    %v841 = vunpack.c.h.b16 %v328
    %v842 = vunpack.c.l.b16 %v329
    %v843 = vunpack.c.h.b16 %v329
    %v844 = vunpack.c.l.b16 %v330
    %v845 = vunpack.c.h.b16 %v330
    %v846 = vunpack.c.l.b16 %v331
    %v847 = vunpack.c.h.b16 %v331
    %v848 = vunpack.c.l.b16 %v332
    %v849 = vunpack.c.h.b16 %v332
    %v850 = vunpack.c.l.b16 %v333
    %v851 = vunpack.c.h.b16 %v333
    %v852 = vunpack.c.l.b16 %v334
    %v853 = vunpack.c.h.b16 %v334
    %v854 = vunpack.c.l.b16 %v335
    %v855 = vunpack.c.h.b16 %v335
    %v856 = vunpack.c.l.b16 %v336
    %v857 = vunpack.c.h.b16 %v336
    %v858 = vunpack.c.l.b16 %v337
    %v859 = vunpack.c.h.b16 %v337
    %v860 = vunpack.c.l.b16 %v338
    %v861 = vunpack.c.h.b16 %v338
    %v862 = vunpack.c.l.b16 %v339
    %v863 = vunpack.c.h.b16 %v339
    %v864 = vunpack.c.l.b16 %v340
    %v865 = vunpack.c.h.b16 %v340
    %v866 = vunpack.c.l.b16 %v341
    %v867 = vunpack.c.h.b16 %v341
    %v868 = vunpack.c.l.b16 %v342
    %v869 = vunpack.c.h.b16 %v342
    %v870 = vunpack.c.l.b16 %v343
    %v871 = vunpack.c.h.b16 %v343
    %v872 = vunpack.c.l.b16 %v344
    %v873 = vunpack.c.h.b16 %v344
    %v874 = vunpack.c.l.b16 %v345
    %v875 = vunpack.c.h.b16 %v345
    %v876 = vunpack.c.l.b16 %v346
    %v877 = vunpack.c.h.b16 %v346
    %v878 = vunpack.c.l.b16 %v347
    %v879 = vunpack.c.h.b16 %v347
    %v880 = vunpack.c.l.b16 %v348
    %v881 = vunpack.c.h.b16 %v348
    %v882 = vunpack.c.l.b16 %v349
    %v883 = vunpack.c.h.b16 %v349
    %v884 = vunpack.c.l.b16 %v350
    %v885 = vunpack.c.h.b16 %v350
    %v886 = vunpack.c.l.b16 %v351
    %v887 = vunpack.c.h.b16 %v351
    %v888 = vunpack.c.l.b16 %v352
    %v889 = vunpack.c.h.b16 %v352
    %v890 = vunpack.c.l.b16 %v353
    %v891 = vunpack.c.h.b16 %v353
    %v892 = vunpack.c.l.b16 %v354
    %v893 = vunpack.c.h.b16 %v354
    %v894 = vunpack.c.l.b16 %v355
    %v895 = vunpack.c.h.b16 %v355
    %v896 = vunpack.c.l.b16 %v356
    %v897 = vunpack.c.h.b16 %v356
    %v898 = vunpack.c.l.b16 %v357
    %v899 = vunpack.c.h.b16 %v357
    %v900 = vunpack.c.l.b16 %v358
    %v901 = vunpack.c.h.b16 %v358
    %v902 = vunpack.c.l.b16 %v359
    %v903 = vunpack.c.h.b16 %v359
    %v904 = vunpack.c.l.b16 %v360
    %v905 = vunpack.c.h.b16 %v360
    %v906 = vunpack.c.l.b16 %v361
    %v907 = vunpack.c.h.b16 %v361
    %v908 = vunpack.c.l.b16 %v362
    %v909 = vunpack.c.h.b16 %v362
    %v910 = vunpack.c.l.b16 %v363
    %v911 = vunpack.c.h.b16 %v363
    %v912 = vunpack.c.l.b16 %v364
    %v913 = vunpack.c.h.b16 %v364
    %v914 = vunpack.c.l.b16 %v365
    %v915 = vunpack.c.h.b16 %v365
    %v916 = vunpack.c.l.b16 %v366
    %v917 = vunpack.c.h.b16 %v366
    %v918 = vunpack.c.l.b16 %v367
    %v919 = vunpack.c.h.b16 %v367
    %v920 = vunpack.c.l.b16 %v368
    %v921 = vunpack.c.h.b16 %v368
    %v922 = vunpack.c.l.b16 %v369
    %v923 = vunpack.c.h.b16 %v369
    %v924 = vunpack.c.l.b16 %v370
    %v925 = vunpack.c.h.b16 %v370
    %v926 = vunpack.c.l.b16 %v371
    %v927 = vunpack.c.h.b16 %v371
    %v928 = vunpack.c.l.b16 %v372
    %v929 = vunpack.c.h.b16 %v372
    %v930 = vunpack.c.l.b16 %v373
    %v931 = vunpack.c.h.b16 %v373
    %v932 = vunpack.c.l.b16 %v374
    %v933 = vunpack.c.h.b16 %v374
    %v934 = vunpack.c.l.b16 %v375
    %v935 = vunpack.c.h.b16 %v375
    %v936 = vunpack.c.l.b16 %v376
    %v937 = vunpack.c.h.b16 %v376
    %v938 = vunpack.c.l.b16 %v377
    %v939 = vunpack.c.h.b16 %v377
    %v940 = vunpack.c.l.b16 %v378
    %v941 = vunpack.c.h.b16 %v378
    %v942 = vunpack.c.l.b16 %v379
    %v943 = vunpack.c.h.b16 %v379
    %v944 = vunpack.c.l.b16 %v380
    %v945 = vunpack.c.h.b16 %v380
    %v946 = vunpack.c.l.b16 %v381
    %v947 = vunpack.c.h.b16 %v381
    %v948 = vunpack.c.l.b16 %v382
    %v949 = vunpack.c.h.b16 %v382
    %v950 = vunpack.c.l.b16 %v383
    %v951 = vunpack.c.h.b16 %v383
    %v952 = vunpack.c.l.b16 %v384
    %v953 = vunpack.c.h.b16 %v384
    %v954 = vunpack.c.l.b16 %v385
    %v955 = vunpack.c.h.b16 %v385
    %v956 = vunpack.c.l.b16 %v386
    %v957 = vunpack.c.h.b16 %v386
    %v958 = vunpack.c.l.b16 %v387
    %v959 = vunpack.c.h.b16 %v387
    %v960 = vunpack.c.l.b16 %v388
    %v961 = vunpack.c.h.b16 %v388
    %v962 = vunpack.c.l.b16 %v389
    %v963 = vunpack.c.h.b16 %v389
    %v964 = vunpack.c.l.b16 %v390
    %v965 = vunpack.c.h.b16 %v390
    %v966 = vunpack.c.l.b16 %v391
    %v967 = vunpack.c.h.b16 %v391
    %v968 = vunpack.c.l.b16 %v392
    %v969 = vunpack.c.h.b16 %v392
    %v970 = vunpack.c.l.b16 %v393
    %v971 = vunpack.c.h.b16 %v393
    %v972 = vunpack.c.l.b16 %v394
    %v973 = vunpack.c.h.b16 %v394
    %v974 = vunpack.c.l.b16 %v395
    %v975 = vunpack.c.h.b16 %v395
    %v976 = vunpack.c.l.b16 %v396
    %v977 = vunpack.c.h.b16 %v396
    %v978 = vunpack.c.l.b16 %v397
    %v979 = vunpack.c.h.b16 %v397
    %v980 = vunpack.c.l.b16 %v398
    %v981 = vunpack.c.h.b16 %v398
    %v982 = vunpack.c.l.b16 %v399
    %v983 = vunpack.c.h.b16 %v399
    %v984 = vunpack.c.l.b16 %v400
    %v985 = vunpack.c.h.b16 %v400
    %v986 = vunpack.c.l.b16 %v401
    %v987 = vunpack.c.h.b16 %v401
    %v988 = vunpack.c.l.b16 %v402
    %v989 = vunpack.c.h.b16 %v402
    %v990 = vunpack.c.l.b16 %v403
    %v991 = vunpack.c.h.b16 %v403
    %v992 = vunpack.c.l.b16 %v404
    %v993 = vunpack.c.h.b16 %v404
    %v994 = vunpack.c.l.b16 %v405
    %v995 = vunpack.c.h.b16 %v405
    %v996 = vunpack.c.l.b16 %v406
    %v997 = vunpack.c.h.b16 %v406
    %v998 = vunpack.c.l.b16 %v407
    %v999 = vunpack.c.h.b16 %v407
    %v1000 = vunpack.c.l.b16 %v408
    %v1001 = vunpack.c.h.b16 %v408
    %v1002 = vunpack.c.l.b16 %v409
    %v1003 = vunpack.c.h.b16 %v409
    %v1004 = vunpack.c.l.b16 %v410
    %v1005 = vunpack.c.h.b16 %v410
    %v1006 = vunpack.c.l.b16 %v411
    %v1007 = vunpack.c.h.b16 %v411
    %v1008 = vunpack.c.l.b16 %v412
    %v1009 = vunpack.c.h.b16 %v412
    %v1010 = vunpack.c.l.b16 %v413
    %v1011 = vunpack.c.h.b16 %v413
    %v1012 = vunpack.c.l.b16 %v414
    %v1013 = vunpack.c.h.b16 %v414
    %v1014 = vunpack.c.l.b16 %v415
    %v1015 = vunpack.c.h.b16 %v415
    %v1016 = vunpack.c.l.b16 %v416
    %v1017 = vunpack.c.h.b16 %v416
    %v1018 = vunpack.c.l.b16 %v417
    %v1019 = vunpack.c.h.b16 %v417
    %v1020 = vunpack.c.l.b16 %v418
    %v1021 = vunpack.c.h.b16 %v418
    %v1022 = vunpack.c.l.b16 %v419
    %v1023 = vunpack.c.h.b16 %v419
    %v1024 = vunpack.c.l.b16 %v420
    %v1025 = vunpack.c.h.b16 %v420
    %v1026 = vunpack.c.l.b16 %v421
    %v1027 = vunpack.c.h.b16 %v421
    %v1028 = vunpack.c.l.b16 %v422
    %v1029 = vunpack.c.h.b16 %v422
    %v1030 = vunpack.c.l.b16 %v423
    %v1031 = vunpack.c.h.b16 %v423
    %v1032 = vunpack.c.l.b16 %v424
    %v1033 = vunpack.c.h.b16 %v424
    %v1034 = vunpack.c.l.b16 %v425
    %v1035 = vunpack.c.h.b16 %v425
    %v1036 = vunpack.c.l.b16 %v426
    %v1037 = vunpack.c.h.b16 %v426
    %v1038 = vunpack.c.l.b16 %v427
    %v1039 = vunpack.c.h.b16 %v427
    %v1040 = vunpack.c.l.b16 %v428
    %v1041 = vunpack.c.h.b16 %v428
    %v1042 = vunpack.c.l.b16 %v429
    %v1043 = vunpack.c.h.b16 %v429
    %v1044 = vunpack.c.l.b16 %v430
    %v1045 = vunpack.c.h.b16 %v430
    %v1046 = vunpack.c.l.b16 %v431
    %v1047 = vunpack.c.h.b16 %v431
    %v1048 = vunpack.c.l.b16 %v432
    %v1049 = vunpack.c.h.b16 %v432
    %v1050 = vunpack.c.l.b16 %v433
    %v1051 = vunpack.c.h.b16 %v433
    %v1052 = vunpack.c.l.b16 %v434
    %v1053 = vunpack.c.h.b16 %v434
    %v1054 = vunpack.c.l.b16 %v435
    %v1055 = vunpack.c.h.b16 %v435
    %v1056 = vunpack.c.l.b16 %v436
    %v1057 = vunpack.c.h.b16 %v436
    %v1058 = vunpack.c.l.b16 %v437
    %v1059 = vunpack.c.h.b16 %v437
    %v1060 = vunpack.c.l.b16 %v438
    %v1061 = vunpack.c.h.b16 %v438
    %v1062 = vunpack.c.l.b16 %v439
    %v1063 = vunpack.c.h.b16 %v439
    %v1064 = vunpack.c.l.b16 %v440
    %v1065 = vunpack.c.h.b16 %v440
    %v1066 = vunpack.c.l.b16 %v441
    %v1067 = vunpack.c.h.b16 %v441
    %v1068 = vunpack.c.l.b16 %v442
    %v1069 = vunpack.c.h.b16 %v442
    %v1070 = vunpack.c.l.b16 %v443
    %v1071 = vunpack.c.h.b16 %v443
    %v1072 = vunpack.c.l.b16 %v444
    %v1073 = vunpack.c.h.b16 %v444
    %v1074 = vunpack.c.l.b16 %v445
    %v1075 = vunpack.c.h.b16 %v445
    %v1076 = vunpack.c.l.b16 %v446
    %v1077 = vunpack.c.h.b16 %v446
    %v1078 = vunpack.c.l.b16 %v447
    %v1079 = vunpack.c.h.b16 %v447
    %v1080 = vunpack.c.l.b16 %v448
    %v1081 = vunpack.c.h.b16 %v448
    %v1082 = vunpack.c.l.b16 %v449
    %v1083 = vunpack.c.h.b16 %v449
    %v1084 = vunpack.c.l.b16 %v450
    %v1085 = vunpack.c.h.b16 %v450
    %v1086 = vunpack.c.l.b16 %v451
    %v1087 = vunpack.c.h.b16 %v451
    %v1088 = vunpack.c.l.b16 %v452
    %v1089 = vunpack.c.h.b16 %v452
    %v1090 = vunpack.c.l.b16 %v453
    %v1091 = vunpack.c.h.b16 %v453
    %v1092 = vunpack.c.l.b16 %v454
    %v1093 = vunpack.c.h.b16 %v454
    %v1094 = vunpack.c.l.b16 %v455
    %v1095 = vunpack.c.h.b16 %v455
    %v1096 = vunpack.c.l.b16 %v456
    %v1097 = vunpack.c.h.b16 %v456
    %v1098 = vunpack.c.l.b16 %v457
    %v1099 = vunpack.c.h.b16 %v457
    %v1100 = vunpack.c.l.b16 %v458
    %v1101 = vunpack.c.h.b16 %v458
    %v1102 = vunpack.c.l.b16 %v459
    %v1103 = vunpack.c.h.b16 %v459
    %v1104 = vunpack.c.l.b16 %v460
    %v1105 = vunpack.c.h.b16 %v460
    %v1106 = vunpack.c.l.b16 %v461
    %v1107 = vunpack.c.h.b16 %v461
    %v1108 = vunpack.c.l.b16 %v462
    %v1109 = vunpack.c.h.b16 %v462
    %v1110 = vunpack.c.l.b16 %v463
    %v1111 = vunpack.c.h.b16 %v463
    %v1112 = vunpack.c.l.b16 %v464
    %v1113 = vunpack.c.h.b16 %v464
    %v1114 = vunpack.c.l.b16 %v465
    %v1115 = vunpack.c.h.b16 %v465
    %v1116 = vunpack.c.l.b16 %v466
    %v1117 = vunpack.c.h.b16 %v466
    %v1118 = vunpack.c.l.b16 %v467
    %v1119 = vunpack.c.h.b16 %v467
    %v1120 = vunpack.c.l.b16 %v468
    %v1121 = vunpack.c.h.b16 %v468
    %v1122 = vunpack.c.l.b16 %v469
    %v1123 = vunpack.c.h.b16 %v469
    %v1124 = vunpack.c.l.b16 %v470
    %v1125 = vunpack.c.h.b16 %v470
    %v1126 = vunpack.c.l.b16 %v471
    %v1127 = vunpack.c.h.b16 %v471
    %v1128 = vunpack.c.l.b16 %v472
    %v1129 = vunpack.c.h.b16 %v472
    %v1130 = vunpack.c.l.b16 %v473
    %v1131 = vunpack.c.h.b16 %v473
    %v1132 = vunpack.c.l.b16 %v474
    %v1133 = vunpack.c.h.b16 %v474
    %v1134 = vunpack.c.l.b16 %v475
    %v1135 = vunpack.c.h.b16 %v475
    %v1136 = vunpack.c.l.b16 %v476
    %v1137 = vunpack.c.h.b16 %v476
    %v1138 = vunpack.c.l.b16 %v477
    %v1139 = vunpack.c.h.b16 %v477
    %v1140 = vunpack.c.l.b16 %v478
    %v1141 = vunpack.c.h.b16 %v478
    %v1142 = vunpack.c.l.b16 %v479
    %v1143 = vunpack.c.h.b16 %v479
    %v1144 = vunpack.c.l.b16 %v480
    %v1145 = vunpack.c.h.b16 %v480
    %v1146 = vunpack.c.l.b16 %v481
    %v1147 = vunpack.c.h.b16 %v481
    %v1148 = vunpack.c.l.b16 %v482
    %v1149 = vunpack.c.h.b16 %v482
    %v1150 = vunpack.c.l.b16 %v483
    %v1151 = vunpack.c.h.b16 %v483
    %v1152 = vunpack.c.l.b16 %v484
    %v1153 = vunpack.c.h.b16 %v484
    %v1154 = vunpack.c.l.b16 %v485
    %v1155 = vunpack.c.h.b16 %v485
    %v1156 = vunpack.c.l.b16 %v486
    %v1157 = vunpack.c.h.b16 %v486
    %v1158 = vunpack.c.l.b16 %v487
    %v1159 = vunpack.c.h.b16 %v487
    %v1160 = vunpack.c.l.b16 %v488
    %v1161 = vunpack.c.h.b16 %v488
    %v1162 = vunpack.c.l.b16 %v489
    %v1163 = vunpack.c.h.b16 %v489
    %v1164 = vunpack.c.l.b16 %v490
    %v1165 = vunpack.c.h.b16 %v490
    %v1166 = vunpack.c.l.b16 %v491
    %v1167 = vunpack.c.h.b16 %v491
    %v1168 = vunpack.c.l.b16 %v492
    %v1169 = vunpack.c.h.b16 %v492
    %v1170 = vunpack.c.l.b16 %v493
    %v1171 = vunpack.c.h.b16 %v493
    %v1172 = vunpack.c.l.b16 %v494
    %v1173 = vunpack.c.h.b16 %v494
    %v1174 = vunpack.c.l.b16 %v495
    %v1175 = vunpack.c.h.b16 %v495
    %v1176 = vunpack.c.l.b16 %v496
    %v1177 = vunpack.c.h.b16 %v496
    %v1178 = vunpack.c.l.b16 %v497
    %v1179 = vunpack.c.h.b16 %v497
    %v1180 = vunpack.c.l.b16 %v498
    %v1181 = vunpack.c.h.b16 %v498
    %v1182 = vunpack.c.l.b16 %v499
    %v1183 = vunpack.c.h.b16 %v499
    %v1184 = vunpack.c.l.b16 %v500
    %v1185 = vunpack.c.h.b16 %v500
    %v1186 = vunpack.c.l.b16 %v501
    %v1187 = vunpack.c.h.b16 %v501
    %v1188 = vunpack.c.l.b16 %v502
    %v1189 = vunpack.c.h.b16 %v502
    %v1190 = vunpack.c.l.b16 %v503
    %v1191 = vunpack.c.h.b16 %v503
    %v1192 = vunpack.c.l.b16 %v504
    %v1193 = vunpack.c.h.b16 %v504
    %v1194 = vunpack.c.l.b16 %v505
    %v1195 = vunpack.c.h.b16 %v505
    %v1196 = vunpack.c.l.b16 %v506
    %v1197 = vunpack.c.h.b16 %v506
    %v1198 = vunpack.c.l.b16 %v507
    %v1199 = vunpack.c.h.b16 %v507
    %v1200 = vunpack.c.l.b16 %v508
    %v1201 = vunpack.c.h.b16 %v508
    %v1202 = vunpack.c.l.b16 %v509
    %v1203 = vunpack.c.h.b16 %v509
    %v1204 = vpack.c.b16 %v760, %v756
    %v1205 = vpack.c.b16 %v761, %v757
    %v1206 = vpack.c.b16 %v762, %v758
    %v1207 = vpack.c.b16 %v763, %v759
    %v1208 = vpack.c.b16 %v768, %v764
    %v1209 = vpack.c.b16 %v769, %v765
    %v1210 = vpack.c.b16 %v770, %v766
    %v1211 = vpack.c.b16 %v771, %v767
    %v1212 = vpack.c.b16 %v776, %v772
    %v1213 = vpack.c.b16 %v777, %v773
    %v1214 = vpack.c.b16 %v778, %v774
    %v1215 = vpack.c.b16 %v779, %v775
    %v1216 = vpack.c.b16 %v784, %v780
    %v1217 = vpack.c.b16 %v785, %v781
    %v1218 = vpack.c.b16 %v786, %v782
    %v1219 = vpack.c.b16 %v787, %v783
    %v1220 = vpack.c.b16 %v792, %v788
    %v1221 = vpack.c.b16 %v793, %v789
    %v1222 = vpack.c.b16 %v794, %v790
    %v1223 = vpack.c.b16 %v795, %v791
    %v1224 = vpack.c.b16 %v800, %v796
    %v1225 = vpack.c.b16 %v801, %v797
    %v1226 = vpack.c.b16 %v802, %v798
    %v1227 = vpack.c.b16 %v803, %v799
    %v1228 = vpack.c.b16 %v808, %v804
    %v1229 = vpack.c.b16 %v809, %v805
    %v1230 = vpack.c.b16 %v810, %v806
    %v1231 = vpack.c.b16 %v811, %v807
    %v1232 = vpack.c.b16 %v816, %v812
    %v1233 = vpack.c.b16 %v817, %v813
    %v1234 = vpack.c.b16 %v818, %v814
    %v1235 = vpack.c.b16 %v819, %v815
    %v1236 = vpack.c.b16 %v824, %v820
    %v1237 = vpack.c.b16 %v825, %v821
    %v1238 = vpack.c.b16 %v826, %v822
    %v1239 = vpack.c.b16 %v827, %v823
    %v1240 = vpack.c.b16 %v832, %v828
    %v1241 = vpack.c.b16 %v833, %v829
    %v1242 = vpack.c.b16 %v834, %v830
    %v1243 = vpack.c.b16 %v835, %v831
    %v1244 = vpack.c.b16 %v840, %v836
    %v1245 = vpack.c.b16 %v841, %v837
    %v1246 = vpack.c.b16 %v842, %v838
    %v1247 = vpack.c.b16 %v843, %v839
    %v1248 = vpack.c.b16 %v848, %v844
    %v1249 = vpack.c.b16 %v849, %v845
    %v1250 = vpack.c.b16 %v850, %v846
    %v1251 = vpack.c.b16 %v851, %v847
    %v1252 = vpack.c.b16 %v856, %v852
    %v1253 = vpack.c.b16 %v857, %v853
    %v1254 = vpack.c.b16 %v858, %v854
    %v1255 = vpack.c.b16 %v859, %v855
    %v1256 = vpack.c.b16 %v864, %v860
    %v1257 = vpack.c.b16 %v865, %v861
    %v1258 = vpack.c.b16 %v866, %v862
    %v1259 = vpack.c.b16 %v867, %v863
    %v1260 = vpack.c.b16 %v872, %v868
    %v1261 = vpack.c.b16 %v873, %v869
    %v1262 = vpack.c.b16 %v874, %v870
    %v1263 = vpack.c.b16 %v875, %v871
    %v1264 = vpack.c.b16 %v880, %v876
    %v1265 = vpack.c.b16 %v881, %v877
    %v1266 = vpack.c.b16 %v882, %v878
    %v1267 = vpack.c.b16 %v883, %v879
    %v1268 = vpack.c.b16 %v888, %v884
    %v1269 = vpack.c.b16 %v889, %v885
    %v1270 = vpack.c.b16 %v890, %v886
    %v1271 = vpack.c.b16 %v891, %v887
    %v1272 = vpack.c.b16 %v896, %v892
    %v1273 = vpack.c.b16 %v897, %v893
    %v1274 = vpack.c.b16 %v898, %v894
    %v1275 = vpack.c.b16 %v899, %v895
    %v1276 = vpack.c.b16 %v904, %v900
    %v1277 = vpack.c.b16 %v905, %v901
    %v1278 = vpack.c.b16 %v906, %v902
    %v1279 = vpack.c.b16 %v907, %v903
    %v1280 = vpack.c.b16 %v912, %v908
    %v1281 = vpack.c.b16 %v913, %v909
    %v1282 = vpack.c.b16 %v914, %v910
    %v1283 = vpack.c.b16 %v915, %v911
    %v1284 = vpack.c.b16 %v920, %v916
    %v1285 = vpack.c.b16 %v921, %v917
    %v1286 = vpack.c.b16 %v922, %v918
    %v1287 = vpack.c.b16 %v923, %v919
    %v1288 = vpack.c.b16 %v928, %v924
    %v1289 = vpack.c.b16 %v929, %v925
    %v1290 = vpack.c.b16 %v930, %v926
    %v1291 = vpack.c.b16 %v931, %v927
    %v1292 = vpack.c.b16 %v936, %v932
    %v1293 = vpack.c.b16 %v937, %v933
    %v1294 = vpack.c.b16 %v938, %v934
    %v1295 = vpack.c.b16 %v939, %v935
    %v1296 = vpack.c.b16 %v944, %v940
    %v1297 = vpack.c.b16 %v945, %v941
    %v1298 = vpack.c.b16 %v946, %v942
    %v1299 = vpack.c.b16 %v947, %v943
    %v1300 = vpack.c.b16 %v952, %v948
    %v1301 = vpack.c.b16 %v953, %v949
    %v1302 = vpack.c.b16 %v954, %v950
    %v1303 = vpack.c.b16 %v955, %v951
    %v1304 = vpack.c.b16 %v960, %v956
    %v1305 = vpack.c.b16 %v961, %v957
    %v1306 = vpack.c.b16 %v962, %v958
    %v1307 = vpack.c.b16 %v963, %v959
    %v1308 = vpack.c.b16 %v968, %v964
    %v1309 = vpack.c.b16 %v969, %v965
    %v1310 = vpack.c.b16 %v970, %v966
    %v1311 = vpack.c.b16 %v971, %v967
    %v1312 = vpack.c.b16 %v976, %v972
    %v1313 = vpack.c.b16 %v977, %v973
    %v1314 = vpack.c.b16 %v978, %v974
    %v1315 = vpack.c.b16 %v979, %v975
    %v1316 = vpack.c.b16 %v984, %v980
    %v1317 = vpack.c.b16 %v985, %v981
    %v1318 = vpack.c.b16 %v986, %v982
    %v1319 = vpack.c.b16 %v987, %v983
    %v1320 = vpack.c.b16 %v992, %v988
    %v1321 = vpack.c.b16 %v993, %v989
    %v1322 = vpack.c.b16 %v994, %v990
    %v1323 = vpack.c.b16 %v995, %v991
    %v1324 = vpack.c.b16 %v1000, %v996
    %v1325 = vpack.c.b16 %v1001, %v997
    %v1326 = vpack.c.b16 %v1002, %v998
    %v1327 = vpack.c.b16 %v1003, %v999
    %v1328 = vpack.c.b16 %v1008, %v1004
    %v1329 = vpack.c.b16 %v1009, %v1005
    %v1330 = vpack.c.b16 %v1010, %v1006
    %v1331 = vpack.c.b16 %v1011, %v1007
    %v1332 = vpack.c.b16 %v1016, %v1012
    %v1333 = vpack.c.b16 %v1017, %v1013
    %v1334 = vpack.c.b16 %v1018, %v1014
    %v1335 = vpack.c.b16 %v1019, %v1015
    %v1336 = vpack.c.b16 %v1024, %v1020
    %v1337 = vpack.c.b16 %v1025, %v1021
    %v1338 = vpack.c.b16 %v1026, %v1022
    %v1339 = vpack.c.b16 %v1027, %v1023
    %v1340 = vpack.c.b16 %v1032, %v1028
    %v1341 = vpack.c.b16 %v1033, %v1029
    %v1342 = vpack.c.b16 %v1034, %v1030
    %v1343 = vpack.c.b16 %v1035, %v1031
    %v1344 = vpack.c.b16 %v1040, %v1036
    %v1345 = vpack.c.b16 %v1041, %v1037
    %v1346 = vpack.c.b16 %v1042, %v1038
    %v1347 = vpack.c.b16 %v1043, %v1039
    %v1348 = vpack.c.b16 %v1048, %v1044
    %v1349 = vpack.c.b16 %v1049, %v1045
    %v1350 = vpack.c.b16 %v1050, %v1046
    %v1351 = vpack.c.b16 %v1051, %v1047
    %v1352 = vpack.c.b16 %v1056, %v1052
    %v1353 = vpack.c.b16 %v1057, %v1053
    %v1354 = vpack.c.b16 %v1058, %v1054
    %v1355 = vpack.c.b16 %v1059, %v1055
    %v1356 = vpack.c.b16 %v1064, %v1060
    %v1357 = vpack.c.b16 %v1065, %v1061
    %v1358 = vpack.c.b16 %v1066, %v1062
    %v1359 = vpack.c.b16 %v1067, %v1063
    %v1360 = vpack.c.b16 %v1072, %v1068
    %v1361 = vpack.c.b16 %v1073, %v1069
    %v1362 = vpack.c.b16 %v1074, %v1070
    %v1363 = vpack.c.b16 %v1075, %v1071
    %v1364 = vpack.c.b16 %v1080, %v1076
    %v1365 = vpack.c.b16 %v1081, %v1077
    %v1366 = vpack.c.b16 %v1082, %v1078
    %v1367 = vpack.c.b16 %v1083, %v1079
    %v1368 = vpack.c.b16 %v1088, %v1084
    %v1369 = vpack.c.b16 %v1089, %v1085
    %v1370 = vpack.c.b16 %v1090, %v1086
    %v1371 = vpack.c.b16 %v1091, %v1087
    %v1372 = vpack.c.b16 %v1096, %v1092
    %v1373 = vpack.c.b16 %v1097, %v1093
    %v1374 = vpack.c.b16 %v1098, %v1094
    %v1375 = vpack.c.b16 %v1099, %v1095
    %v1376 = vpack.c.b16 %v1104, %v1100
    %v1377 = vpack.c.b16 %v1105, %v1101
    %v1378 = vpack.c.b16 %v1106, %v1102
    %v1379 = vpack.c.b16 %v1107, %v1103
    %v1380 = vpack.c.b16 %v1112, %v1108
    %v1381 = vpack.c.b16 %v1113, %v1109
    %v1382 = vpack.c.b16 %v1114, %v1110
    %v1383 = vpack.c.b16 %v1115, %v1111
    %v1384 = vpack.c.b16 %v1120, %v1116
    %v1385 = vpack.c.b16 %v1121, %v1117
    %v1386 = vpack.c.b16 %v1122, %v1118
    %v1387 = vpack.c.b16 %v1123, %v1119
    %v1388 = vpack.c.b16 %v1128, %v1124
    %v1389 = vpack.c.b16 %v1129, %v1125
    %v1390 = vpack.c.b16 %v1130, %v1126
    %v1391 = vpack.c.b16 %v1131, %v1127
    %v1392 = vpack.c.b16 %v1136, %v1132
    %v1393 = vpack.c.b16 %v1137, %v1133
    %v1394 = vpack.c.b16 %v1138, %v1134
    %v1395 = vpack.c.b16 %v1139, %v1135
    %v1396 = vpack.c.b16 %v1144, %v1140
    %v1397 = vpack.c.b16 %v1145, %v1141
    %v1398 = vpack.c.b16 %v1146, %v1142
    %v1399 = vpack.c.b16 %v1147, %v1143
    %v1400 = vpack.c.b16 %v1152, %v1148
    %v1401 = vpack.c.b16 %v1153, %v1149
    %v1402 = vpack.c.b16 %v1154, %v1150
    %v1403 = vpack.c.b16 %v1155, %v1151
    %v1404 = vpack.c.b16 %v1160, %v1156
    %v1405 = vpack.c.b16 %v1161, %v1157
    %v1406 = vpack.c.b16 %v1162, %v1158
    %v1407 = vpack.c.b16 %v1163, %v1159
    %v1408 = vpack.c.b16 %v1168, %v1164
    %v1409 = vpack.c.b16 %v1169, %v1165
    %v1410 = vpack.c.b16 %v1170, %v1166
    %v1411 = vpack.c.b16 %v1171, %v1167
    %v1412 = vpack.c.b16 %v1176, %v1172
    %v1413 = vpack.c.b16 %v1177, %v1173
    %v1414 = vpack.c.b16 %v1178, %v1174
    %v1415 = vpack.c.b16 %v1179, %v1175
    %v1416 = vpack.c.b16 %v1184, %v1180
    %v1417 = vpack.c.b16 %v1185, %v1181
    %v1418 = vpack.c.b16 %v1186, %v1182
    %v1419 = vpack.c.b16 %v1187, %v1183
    %v1420 = vpack.c.b16 %v1192, %v1188
    %v1421 = vpack.c.b16 %v1193, %v1189
    %v1422 = vpack.c.b16 %v1194, %v1190
    %v1423 = vpack.c.b16 %v1195, %v1191
    %v1424 = vpack.c.b16 %v1200, %v1196
    %v1425 = vpack.c.b16 %v1201, %v1197
    %v1426 = vpack.c.b16 %v1202, %v1198
    %v1427 = vpack.c.b16 %v1203, %v1199
    %1652 = vmatprep.subr.bf16.mxu0 %v1233
    %1653 = vmatpush1.bf16.msra.mxu0 %v1232
    %1654 = vmatprep.subr.bf16.mxu0 %v1229
    %1655 = vmatpush1.bf16.msra.mxu0 %v1228
    %1656 = vmatprep.subr.bf16.mxu0 %v1225
    %1657 = vmatpush1.bf16.msra.mxu0 %v1224
    %1658 = vmatprep.subr.bf16.mxu0 %v1221
    %1659 = vmatpush1.bf16.msra.mxu0 %v1220
    %1660 = vmatprep.subr.bf16.mxu0 %v1217
    %1661 = vmatpush1.bf16.msra.mxu0 %v1216
    %1662 = vmatprep.subr.bf16.mxu0 %v1213
    %1663 = vmatpush1.bf16.msra.mxu0 %v1212
    %1664 = vmatprep.subr.bf16.mxu0 %v1209
    %1665 = vmatpush1.bf16.msra.mxu0 %v1208
    %1666 = vmatprep.subr.bf16.mxu0 %v1205
    %1667 = vmatpush1.bf16.msra.mxu0 %v1204
    %1668 = vmatprep.subr.bf16.mxu0 %v1265
    %1669 = vmatpush2.bf16.msra.mxu0 %v1264
    %1670 = vmatprep.subr.bf16.mxu0 %v1261
    %1671 = vmatpush2.bf16.msra.mxu0 %v1260
    %1672 = vmatprep.subr.bf16.mxu0 %v1257
    %1673 = vmatpush2.bf16.msra.mxu0 %v1256
    %1674 = vmatprep.subr.bf16.mxu0 %v1253
    %1675 = vmatpush2.bf16.msra.mxu0 %v1252
    %1676 = vmatprep.subr.bf16.mxu0 %v1249
    %1677 = vmatpush2.bf16.msra.mxu0 %v1248
    %1678 = vmatprep.subr.bf16.mxu0 %v1245
    %1679 = vmatpush2.bf16.msra.mxu0 %v1244
    %1680 = vmatprep.subr.bf16.mxu0 %v1241
    %1681 = vmatpush2.bf16.msra.mxu0 %v1240
    %1682 = vmatprep.subr.bf16.mxu0 %v1237
    %1683 = vmatpush2.bf16.msra.mxu0 %v1236
    %1684 = vmatprep.mubr.bf16.mxu0 %v280
    %1685 = vmatmul.mubr.bf16.gmra.mxu0 %v279
    %v1686 = vpop.f32.mrf.mxu0
    %v1687 = vadd.f32 %v515, %v1686
    %v1688 = vpop.f32.mrf.mxu0
    %v1689 = vadd.f32 %v519, %v1688
    %v1690 = vpop.f32.mrf.mxu0
    %v1691 = vpop.f32.mrf.mxu0
    %1692 = vdwg.mxu0
    %1693 = vmatprep.subr.bf16.mxu0 %v1297
    %1694 = vmatpush1.bf16.msra.mxu0 %v1296
    %1695 = vmatprep.subr.bf16.mxu0 %v1293
    %1696 = vmatpush1.bf16.msra.mxu0 %v1292
    %1697 = vmatprep.subr.bf16.mxu0 %v1289
    %1698 = vmatpush1.bf16.msra.mxu0 %v1288
    %1699 = vmatprep.subr.bf16.mxu0 %v1285
    %1700 = vmatpush1.bf16.msra.mxu0 %v1284
    %1701 = vmatprep.subr.bf16.mxu0 %v1281
    %1702 = vmatpush1.bf16.msra.mxu0 %v1280
    %1703 = vmatprep.subr.bf16.mxu0 %v1277
    %1704 = vmatpush1.bf16.msra.mxu0 %v1276
    %1705 = vmatprep.subr.bf16.mxu0 %v1273
    %1706 = vmatpush1.bf16.msra.mxu0 %v1272
    %1707 = vmatprep.subr.bf16.mxu0 %v1269
    %1708 = vmatpush1.bf16.msra.mxu0 %v1268
    %1709 = vmatprep.subr.bf16.mxu0 %v1329
    %1710 = vmatpush2.bf16.msra.mxu0 %v1328
    %1711 = vmatprep.subr.bf16.mxu0 %v1325
    %1712 = vmatpush2.bf16.msra.mxu0 %v1324
    %1713 = vmatprep.subr.bf16.mxu0 %v1321
    %1714 = vmatpush2.bf16.msra.mxu0 %v1320
    %1715 = vmatprep.subr.bf16.mxu0 %v1317
    %1716 = vmatpush2.bf16.msra.mxu0 %v1316
    %1717 = vmatprep.subr.bf16.mxu0 %v1313
    %1718 = vmatpush2.bf16.msra.mxu0 %v1312
    %1719 = vmatprep.subr.bf16.mxu0 %v1309
    %1720 = vmatpush2.bf16.msra.mxu0 %v1308
    %1721 = vmatprep.subr.bf16.mxu0 %v1305
    %1722 = vmatpush2.bf16.msra.mxu0 %v1304
    %1723 = vmatprep.subr.bf16.mxu0 %v1301
    %1724 = vmatpush2.bf16.msra.mxu0 %v1300
    %1725 = vmatprep.mubr.bf16.mxu0 %v282
    %1726 = vmatmul.mubr.bf16.gmra.mxu0 %v281
    %v1727 = vpop.f32.mrf.mxu0
    %v1728 = vadd.f32 %v1687, %v1727
    %v1729 = vpop.f32.mrf.mxu0
    %v1730 = vadd.f32 %v1689, %v1729
    %v1731 = vpop.f32.mrf.mxu0
    %v1732 = vpop.f32.mrf.mxu0
    %1733 = vdwg.mxu0
    %1734 = vmatprep.subr.bf16.mxu0 %v1361
    %1735 = vmatpush1.bf16.msra.mxu0 %v1360
    %1736 = vmatprep.subr.bf16.mxu0 %v1357
    %1737 = vmatpush1.bf16.msra.mxu0 %v1356
    %1738 = vmatprep.subr.bf16.mxu0 %v1353
    %1739 = vmatpush1.bf16.msra.mxu0 %v1352
    %1740 = vmatprep.subr.bf16.mxu0 %v1349
    %1741 = vmatpush1.bf16.msra.mxu0 %v1348
    %1742 = vmatprep.subr.bf16.mxu0 %v1345
    %1743 = vmatpush1.bf16.msra.mxu0 %v1344
    %1744 = vmatprep.subr.bf16.mxu0 %v1341
    %1745 = vmatpush1.bf16.msra.mxu0 %v1340
    %1746 = vmatprep.subr.bf16.mxu0 %v1337
    %1747 = vmatpush1.bf16.msra.mxu0 %v1336
    %1748 = vmatprep.subr.bf16.mxu0 %v1333
    %1749 = vmatpush1.bf16.msra.mxu0 %v1332
    %1750 = vmatprep.subr.bf16.mxu0 %v1393
    %1751 = vmatpush2.bf16.msra.mxu0 %v1392
    %1752 = vmatprep.subr.bf16.mxu0 %v1389
    %1753 = vmatpush2.bf16.msra.mxu0 %v1388
    %1754 = vmatprep.subr.bf16.mxu0 %v1385
    %1755 = vmatpush2.bf16.msra.mxu0 %v1384
    %1756 = vmatprep.subr.bf16.mxu0 %v1381
    %1757 = vmatpush2.bf16.msra.mxu0 %v1380
    %1758 = vmatprep.subr.bf16.mxu0 %v1377
    %1759 = vmatpush2.bf16.msra.mxu0 %v1376
    %1760 = vmatprep.subr.bf16.mxu0 %v1373
    %1761 = vmatpush2.bf16.msra.mxu0 %v1372
    %1762 = vmatprep.subr.bf16.mxu0 %v1369
    %1763 = vmatpush2.bf16.msra.mxu0 %v1368
    %1764 = vmatprep.subr.bf16.mxu0 %v1365
    %1765 = vmatpush2.bf16.msra.mxu0 %v1364
    %1766 = vmatprep.mubr.bf16.mxu0 %v284
    %1767 = vmatmul.mubr.bf16.gmra.mxu0 %v283
    %v1768 = vpop.f32.mrf.mxu0
    %v1769 = vadd.f32 %v1728, %v1768
    %v1770 = vpop.f32.mrf.mxu0
    %v1771 = vadd.f32 %v1730, %v1770
    %v1772 = vpop.f32.mrf.mxu0
    %v1773 = vpop.f32.mrf.mxu0
    %1774 = vdwg.mxu0
    %1775 = vmatprep.subr.bf16.mxu0 %v1425
    %1776 = vmatpush1.bf16.msra.mxu0 %v1424
    %1777 = vmatprep.subr.bf16.mxu0 %v1421
    %1778 = vmatpush1.bf16.msra.mxu0 %v1420
    %1779 = vmatprep.subr.bf16.mxu0 %v1417
    %1780 = vmatpush1.bf16.msra.mxu0 %v1416
    %1781 = vmatprep.subr.bf16.mxu0 %v1413
    %1782 = vmatpush1.bf16.msra.mxu0 %v1412
    %1783 = vmatprep.subr.bf16.mxu0 %v1409
    %1784 = vmatpush1.bf16.msra.mxu0 %v1408
    %1785 = vmatprep.subr.bf16.mxu0 %v1405
    %1786 = vmatpush1.bf16.msra.mxu0 %v1404
    %1787 = vmatprep.subr.bf16.mxu0 %v1401
    %1788 = vmatpush1.bf16.msra.mxu0 %v1400
    %1789 = vmatprep.subr.bf16.mxu0 %v1397
    %1790 = vmatpush1.bf16.msra.mxu0 %v1396
    %1791 = vmatprep.subr.bf16.mxu0 0
    %1792 = vmatpush2.bf16.msra.mxu0 0
    %1793 = vmatprep.subr.bf16.mxu0 0
    %1794 = vmatpush2.bf16.msra.mxu0 0
    %1795 = vmatprep.subr.bf16.mxu0 0
    %1796 = vmatpush2.bf16.msra.mxu0 0
    %1797 = vmatprep.subr.bf16.mxu0 0
    %1798 = vmatpush2.bf16.msra.mxu0 0
    %1799 = vmatprep.subr.bf16.mxu0 0
    %1800 = vmatpush2.bf16.msra.mxu0 0
    %1801 = vmatprep.subr.bf16.mxu0 0
    %1802 = vmatpush2.bf16.msra.mxu0 0
    %1803 = vmatprep.subr.bf16.mxu0 0
    %1804 = vmatpush2.bf16.msra.mxu0 0
    %1805 = vmatprep.subr.bf16.mxu0 0
    %1806 = vmatpush2.bf16.msra.mxu0 0
    %1807 = vmatprep.mubr.bf16.mxu0 0
    %1808 = vmatmul.mubr.bf16.gmra.mxu0 %v285
    %v1809 = vpop.f32.mrf.mxu0
    %v1810 = vadd.f32 %v1769, %v1809
    %v1811 = vpop.f32.mrf.mxu0
    %v1812 = vadd.f32 %v1771, %v1811
    %v1813 = vpop.f32.mrf.mxu0
    %v1814 = vpop.f32.mrf.mxu0
    %1815 = vdwg.mxu0
    %1816 = vmatprep.subr.bf16.mxu0 %v1235
    %1817 = vmatpush1.bf16.msra.mxu0 %v1234
    %1818 = vmatprep.subr.bf16.mxu0 %v1231
    %1819 = vmatpush1.bf16.msra.mxu0 %v1230
    %1820 = vmatprep.subr.bf16.mxu0 %v1227
    %1821 = vmatpush1.bf16.msra.mxu0 %v1226
    %1822 = vmatprep.subr.bf16.mxu0 %v1223
    %1823 = vmatpush1.bf16.msra.mxu0 %v1222
    %1824 = vmatprep.subr.bf16.mxu0 %v1219
    %1825 = vmatpush1.bf16.msra.mxu0 %v1218
    %1826 = vmatprep.subr.bf16.mxu0 %v1215
    %1827 = vmatpush1.bf16.msra.mxu0 %v1214
    %1828 = vmatprep.subr.bf16.mxu0 %v1211
    %1829 = vmatpush1.bf16.msra.mxu0 %v1210
    %1830 = vmatprep.subr.bf16.mxu0 %v1207
    %1831 = vmatpush1.bf16.msra.mxu0 %v1206
    %1832 = vmatprep.subr.bf16.mxu0 %v1267
    %1833 = vmatpush2.bf16.msra.mxu0 %v1266
    %1834 = vmatprep.subr.bf16.mxu0 %v1263
    %1835 = vmatpush2.bf16.msra.mxu0 %v1262
    %1836 = vmatprep.subr.bf16.mxu0 %v1259
    %1837 = vmatpush2.bf16.msra.mxu0 %v1258
    %1838 = vmatprep.subr.bf16.mxu0 %v1255
    %1839 = vmatpush2.bf16.msra.mxu0 %v1254
    %1840 = vmatprep.subr.bf16.mxu0 %v1251
    %1841 = vmatpush2.bf16.msra.mxu0 %v1250
    %1842 = vmatprep.subr.bf16.mxu0 %v1247
    %1843 = vmatpush2.bf16.msra.mxu0 %v1246
    %1844 = vmatprep.subr.bf16.mxu0 %v1243
    %1845 = vmatpush2.bf16.msra.mxu0 %v1242
    %1846 = vmatprep.subr.bf16.mxu0 %v1239
    %1847 = vmatpush2.bf16.msra.mxu0 %v1238
    %1848 = vmatprep.mubr.bf16.mxu0 %v280
    %1849 = vmatmul.mubr.bf16.gmra.mxu0 %v279
    %v1850 = vpop.f32.mrf.mxu0
    %v1851 = vadd.f32 %v523, %v1850
    %v1852 = vpop.f32.mrf.mxu0
    %v1853 = vadd.f32 %v527, %v1852
    %v1854 = vpop.f32.mrf.mxu0
    %v1855 = vpop.f32.mrf.mxu0
    %1856 = vdwg.mxu0
    %1857 = vmatprep.subr.bf16.mxu0 %v1299
    %1858 = vmatpush1.bf16.msra.mxu0 %v1298
    %1859 = vmatprep.subr.bf16.mxu0 %v1295
    %1860 = vmatpush1.bf16.msra.mxu0 %v1294
    %1861 = vmatprep.subr.bf16.mxu0 %v1291
    %1862 = vmatpush1.bf16.msra.mxu0 %v1290
    %1863 = vmatprep.subr.bf16.mxu0 %v1287
    %1864 = vmatpush1.bf16.msra.mxu0 %v1286
    %1865 = vmatprep.subr.bf16.mxu0 %v1283
    %1866 = vmatpush1.bf16.msra.mxu0 %v1282
    %1867 = vmatprep.subr.bf16.mxu0 %v1279
    %1868 = vmatpush1.bf16.msra.mxu0 %v1278
    %1869 = vmatprep.subr.bf16.mxu0 %v1275
    %1870 = vmatpush1.bf16.msra.mxu0 %v1274
    %1871 = vmatprep.subr.bf16.mxu0 %v1271
    %1872 = vmatpush1.bf16.msra.mxu0 %v1270
    %1873 = vmatprep.subr.bf16.mxu0 %v1331
    %1874 = vmatpush2.bf16.msra.mxu0 %v1330
    %1875 = vmatprep.subr.bf16.mxu0 %v1327
    %1876 = vmatpush2.bf16.msra.mxu0 %v1326
    %1877 = vmatprep.subr.bf16.mxu0 %v1323
    %1878 = vmatpush2.bf16.msra.mxu0 %v1322
    %1879 = vmatprep.subr.bf16.mxu0 %v1319
    %1880 = vmatpush2.bf16.msra.mxu0 %v1318
    %1881 = vmatprep.subr.bf16.mxu0 %v1315
    %1882 = vmatpush2.bf16.msra.mxu0 %v1314
    %1883 = vmatprep.subr.bf16.mxu0 %v1311
    %1884 = vmatpush2.bf16.msra.mxu0 %v1310
    %1885 = vmatprep.subr.bf16.mxu0 %v1307
    %1886 = vmatpush2.bf16.msra.mxu0 %v1306
    %1887 = vmatprep.subr.bf16.mxu0 %v1303
    %1888 = vmatpush2.bf16.msra.mxu0 %v1302
    %1889 = vmatprep.mubr.bf16.mxu0 %v282
    %1890 = vmatmul.mubr.bf16.gmra.mxu0 %v281
    %v1891 = vpop.f32.mrf.mxu0
    %v1892 = vadd.f32 %v1851, %v1891
    %v1893 = vpop.f32.mrf.mxu0
    %v1894 = vadd.f32 %v1853, %v1893
    %v1895 = vpop.f32.mrf.mxu0
    %v1896 = vpop.f32.mrf.mxu0
    %1897 = vdwg.mxu0
    %1898 = vmatprep.subr.bf16.mxu0 %v1363
    %1899 = vmatpush1.bf16.msra.mxu0 %v1362
    %1900 = vmatprep.subr.bf16.mxu0 %v1359
    %1901 = vmatpush1.bf16.msra.mxu0 %v1358
    %1902 = vmatprep.subr.bf16.mxu0 %v1355
    %1903 = vmatpush1.bf16.msra.mxu0 %v1354
    %1904 = vmatprep.subr.bf16.mxu0 %v1351
    %1905 = vmatpush1.bf16.msra.mxu0 %v1350
    %1906 = vmatprep.subr.bf16.mxu0 %v1347
    %1907 = vmatpush1.bf16.msra.mxu0 %v1346
    %1908 = vmatprep.subr.bf16.mxu0 %v1343
    %1909 = vmatpush1.bf16.msra.mxu0 %v1342
    %1910 = vmatprep.subr.bf16.mxu0 %v1339
    %1911 = vmatpush1.bf16.msra.mxu0 %v1338
    %1912 = vmatprep.subr.bf16.mxu0 %v1335
    %1913 = vmatpush1.bf16.msra.mxu0 %v1334
    %1914 = vmatprep.subr.bf16.mxu0 %v1395
    %1915 = vmatpush2.bf16.msra.mxu0 %v1394
    %1916 = vmatprep.subr.bf16.mxu0 %v1391
    %1917 = vmatpush2.bf16.msra.mxu0 %v1390
    %1918 = vmatprep.subr.bf16.mxu0 %v1387
    %1919 = vmatpush2.bf16.msra.mxu0 %v1386
    %1920 = vmatprep.subr.bf16.mxu0 %v1383
    %1921 = vmatpush2.bf16.msra.mxu0 %v1382
    %1922 = vmatprep.subr.bf16.mxu0 %v1379
    %1923 = vmatpush2.bf16.msra.mxu0 %v1378
    %1924 = vmatprep.subr.bf16.mxu0 %v1375
    %1925 = vmatpush2.bf16.msra.mxu0 %v1374
    %1926 = vmatprep.subr.bf16.mxu0 %v1371
    %1927 = vmatpush2.bf16.msra.mxu0 %v1370
    %1928 = vmatprep.subr.bf16.mxu0 %v1367
    %1929 = vmatpush2.bf16.msra.mxu0 %v1366
    %1930 = vmatprep.mubr.bf16.mxu0 %v284
    %1931 = vmatmul.mubr.bf16.gmra.mxu0 %v283
    %v1932 = vpop.f32.mrf.mxu0
    %v1933 = vadd.f32 %v1892, %v1932
    %v1934 = vpop.f32.mrf.mxu0
    %v1935 = vadd.f32 %v1894, %v1934
    %v1936 = vpop.f32.mrf.mxu0
    %v1937 = vpop.f32.mrf.mxu0
    %1938 = vdwg.mxu0
    %1939 = vmatprep.subr.bf16.mxu0 %v1427
    %1940 = vmatpush1.bf16.msra.mxu0 %v1426
    %1941 = vmatprep.subr.bf16.mxu0 %v1423
    %1942 = vmatpush1.bf16.msra.mxu0 %v1422
    %1943 = vmatprep.subr.bf16.mxu0 %v1419
    %1944 = vmatpush1.bf16.msra.mxu0 %v1418
    %1945 = vmatprep.subr.bf16.mxu0 %v1415
    %1946 = vmatpush1.bf16.msra.mxu0 %v1414
    %1947 = vmatprep.subr.bf16.mxu0 %v1411
    %1948 = vmatpush1.bf16.msra.mxu0 %v1410
    %1949 = vmatprep.subr.bf16.mxu0 %v1407
    %1950 = vmatpush1.bf16.msra.mxu0 %v1406
    %1951 = vmatprep.subr.bf16.mxu0 %v1403
    %1952 = vmatpush1.bf16.msra.mxu0 %v1402
    %1953 = vmatprep.subr.bf16.mxu0 %v1399
    %1954 = vmatpush1.bf16.msra.mxu0 %v1398
    %1955 = vmatprep.subr.bf16.mxu0 0
    %1956 = vmatpush2.bf16.msra.mxu0 0
    %1957 = vmatprep.subr.bf16.mxu0 0
    %1958 = vmatpush2.bf16.msra.mxu0 0
    %1959 = vmatprep.subr.bf16.mxu0 0
    %1960 = vmatpush2.bf16.msra.mxu0 0
    %1961 = vmatprep.subr.bf16.mxu0 0
    %1962 = vmatpush2.bf16.msra.mxu0 0
    %1963 = vmatprep.subr.bf16.mxu0 0
    %1964 = vmatpush2.bf16.msra.mxu0 0
    %1965 = vmatprep.subr.bf16.mxu0 0
    %1966 = vmatpush2.bf16.msra.mxu0 0
    %1967 = vmatprep.subr.bf16.mxu0 0
    %1968 = vmatpush2.bf16.msra.mxu0 0
    %1969 = vmatprep.subr.bf16.mxu0 0
    %1970 = vmatpush2.bf16.msra.mxu0 0
    %1971 = vmatprep.mubr.bf16.mxu0 0
    %1972 = vmatmul.mubr.bf16.gmra.mxu0 %v285
    %v1973 = vpop.f32.mrf.mxu0
    %v1974 = vadd.f32 %v1933, %v1973
    %v1975 = vpop.f32.mrf.mxu0
    %v1976 = vadd.f32 %v1935, %v1975
    %v1977 = vpop.f32.mrf.mxu0
    %v1978 = vpop.f32.mrf.mxu0
    %1979 = vdwg.mxu0
    %v1980 = vmax.f32 %v1810, 0.0
    %v1981 = vmax.f32 %v1812, 0.0
    %v1982 = vmax.f32 %v1974, 0.0
    %v1983 = vmax.f32 %v1976, 0.0
    %v1984 = vpack.c.bf16 %v1980, %v1980
    %v1985 = vpack.c.bf16 %v1981, %v1981
    %v1986 = vpack.c.bf16 %v1982, %v1982
    %v1987 = vpack.c.bf16 %v1983, %v1983
    %v1988 = vld [vmem:[#allocation7] sm:$0xf]
    %v1989 = vld [vmem:[#allocation7 + $0x4] sm:$0xf]
    %v1990 = vld [vmem:[#allocation7 + $0x8] sm:$0xf]
    %v1991 = vld [vmem:[#allocation7 + $0xc] sm:$0xf]
    %v1992 = vld [vmem:[#allocation7 + $0x10] sm:$0xf]
    %v1993 = vld [vmem:[#allocation7 + $0x14] sm:$0xf]
    %v1994 = vld [vmem:[#allocation7 + $0x18] sm:$0xf]
    %v1995 = vld [vmem:[#allocation7 + $0x1c] sm:$0xf]
    %v1996 = vld [vmem:[#allocation7 + $0x20] sm:$0xf]
    %v1997 = vld [vmem:[#allocation7 + $0x24] sm:$0xf]
    %v1998 = vld [vmem:[#allocation7 + $0x28] sm:$0xf]
    %v1999 = vld [vmem:[#allocation7 + $0x2c] sm:$0xf]
    %v2000 = vld [vmem:[#allocation7 + $0x30] sm:$0xf]
    %v2001 = vld [vmem:[#allocation7 + $0x34] sm:$0xf]
    %v2002 = vld [vmem:[#allocation7 + $0x38] sm:$0xf]
    %v2003 = vld [vmem:[#allocation7 + $0x3c] sm:$0xf]
    %v2004 = vld [vmem:[#allocation7 + $0x40] sm:$0xf]
    %v2005 = vld [vmem:[#allocation7 + $0x44] sm:$0xf]
    %v2006 = vld [vmem:[#allocation7 + $0x48] sm:$0xf]
    %v2007 = vld [vmem:[#allocation7 + $0x4c] sm:$0xf]
    %v2008 = vld [vmem:[#allocation7 + $0x50] sm:$0xf]
    %v2009 = vld [vmem:[#allocation7 + $0x54] sm:$0xf]
    %v2010 = vld [vmem:[#allocation7 + $0x58] sm:$0xf]
    %v2011 = vld [vmem:[#allocation7 + $0x5c] sm:$0xf]
    %v2012 = vld [vmem:[#allocation7 + $0x60] sm:$0xf]
    %v2013 = vld [vmem:[#allocation7 + $0x64] sm:$0xf]
    %v2014 = vld [vmem:[#allocation7 + $0x68] sm:$0xf]
    %v2015 = vld [vmem:[#allocation7 + $0x6c] sm:$0xf]
    %v2016 = vld [vmem:[#allocation7 + $0x70] sm:$0xf]
    %v2017 = vld [vmem:[#allocation7 + $0x74] sm:$0xf]
    %v2018 = vld [vmem:[#allocation7 + $0x78] sm:$0xf]
    %v2019 = vld [vmem:[#allocation7 + $0x7c] sm:$0xf]
    %v2020 = vld [vmem:[#allocation7 + $0x80] sm:$0xf]
    %v2021 = vld [vmem:[#allocation7 + $0x84] sm:$0xf]
    %v2022 = vld [vmem:[#allocation7 + $0x88] sm:$0xf]
    %v2023 = vld [vmem:[#allocation7 + $0x8c] sm:$0xf]
    %v2024 = vld [vmem:[#allocation7 + $0x90] sm:$0xf]
    %v2025 = vld [vmem:[#allocation7 + $0x94] sm:$0xf]
    %v2026 = vld [vmem:[#allocation7 + $0x98] sm:$0xf]
    %v2027 = vld [vmem:[#allocation7 + $0x9c] sm:$0xf]
    %v2028 = vld [vmem:[#allocation7 + $0xa0] sm:$0xf]
    %v2029 = vld [vmem:[#allocation7 + $0xa4] sm:$0xf]
    %v2030 = vld [vmem:[#allocation7 + $0xa8] sm:$0xf]
    %v2031 = vld [vmem:[#allocation7 + $0xac] sm:$0xf]
    %v2032 = vld [vmem:[#allocation7 + $0xb0] sm:$0xf]
    %v2033 = vld [vmem:[#allocation7 + $0xb4] sm:$0xf]
    %v2034 = vld [vmem:[#allocation7 + $0xb8] sm:$0xf]
    %v2035 = vld [vmem:[#allocation7 + $0xbc] sm:$0xf]
    %v2036 = vld [vmem:[#allocation7 + $0xc0] sm:$0xf]
    %v2037 = vld [vmem:[#allocation7 + $0xc4] sm:$0xf]
    %v2038 = vld [vmem:[#allocation7 + $0xc8] sm:$0xf]
    %v2039 = vld [vmem:[#allocation7 + $0xcc] sm:$0xf]
    %v2040 = vld [vmem:[#allocation7 + $0xd0] sm:$0xf]
    %v2041 = vld [vmem:[#allocation7 + $0xd4] sm:$0xf]
    %v2042 = vld [vmem:[#allocation7 + $0xd8] sm:$0xf]
    %v2043 = vld [vmem:[#allocation7 + $0xdc] sm:$0xf]
    %v2044 = vld [vmem:[#allocation7 + $0xe0] sm:$0xf]
    %v2045 = vld [vmem:[#allocation7 + $0xe4] sm:$0xf]
    %v2046 = vld [vmem:[#allocation7 + $0xe8] sm:$0xf]
    %v2047 = vld [vmem:[#allocation7 + $0xec] sm:$0xf]
    %v2048 = vld [vmem:[#allocation7 + $0xf0] sm:$0xf]
    %v2049 = vld [vmem:[#allocation7 + $0xf4] sm:$0xf]
    %v2050 = vld [vmem:[#allocation7 + $0xf8] sm:$0xf]
    %v2051 = vld [vmem:[#allocation7 + $0xfc] sm:$0xf]
    %v2052 = vld [vmem:[%s6] sm:$0x1]
    %v2054 = vlaneseq
    %v2055 = vshrl.u32 %v2054, 7
    %v2056 = vsub.s32 0, %v2055
    %v2057 = vrot.slane %v2052, %v2056
    %v2123 = vunpack.c.l.b16 %v1988
    %v2124 = vunpack.c.l.b16 %v1989
    %v2125 = vunpack.c.l.b16 %v1990
    %v2126 = vunpack.c.l.b16 %v1991
    %v2127 = vunpack.c.l.b16 %v1992
    %v2128 = vunpack.c.l.b16 %v1993
    %v2129 = vunpack.c.l.b16 %v1994
    %v2130 = vunpack.c.l.b16 %v1995
    %v2131 = vunpack.c.l.b16 %v1996
    %v2132 = vunpack.c.l.b16 %v1997
    %v2133 = vunpack.c.l.b16 %v1998
    %v2134 = vunpack.c.l.b16 %v1999
    %v2135 = vunpack.c.l.b16 %v2000
    %v2136 = vunpack.c.l.b16 %v2001
    %v2137 = vunpack.c.l.b16 %v2002
    %v2138 = vunpack.c.l.b16 %v2003
    %v2139 = vunpack.c.l.b16 %v2004
    %v2140 = vunpack.c.l.b16 %v2005
    %v2141 = vunpack.c.l.b16 %v2006
    %v2142 = vunpack.c.l.b16 %v2007
    %v2143 = vunpack.c.l.b16 %v2008
    %v2144 = vunpack.c.l.b16 %v2009
    %v2145 = vunpack.c.l.b16 %v2010
    %v2146 = vunpack.c.l.b16 %v2011
    %v2147 = vunpack.c.l.b16 %v2012
    %v2148 = vunpack.c.l.b16 %v2013
    %v2149 = vunpack.c.l.b16 %v2014
    %v2150 = vunpack.c.l.b16 %v2015
    %v2151 = vunpack.c.l.b16 %v2016
    %v2152 = vunpack.c.l.b16 %v2017
    %v2153 = vunpack.c.l.b16 %v2018
    %v2154 = vunpack.c.l.b16 %v2019
    %v2155 = vunpack.c.l.b16 %v2020
    %v2156 = vunpack.c.l.b16 %v2021
    %v2157 = vunpack.c.l.b16 %v2022
    %v2158 = vunpack.c.l.b16 %v2023
    %v2159 = vunpack.c.l.b16 %v2024
    %v2160 = vunpack.c.l.b16 %v2025
    %v2161 = vunpack.c.l.b16 %v2026
    %v2162 = vunpack.c.l.b16 %v2027
    %v2163 = vunpack.c.l.b16 %v2028
    %v2164 = vunpack.c.l.b16 %v2029
    %v2165 = vunpack.c.l.b16 %v2030
    %v2166 = vunpack.c.l.b16 %v2031
    %v2167 = vunpack.c.l.b16 %v2032
    %v2168 = vunpack.c.l.b16 %v2033
    %v2169 = vunpack.c.l.b16 %v2034
    %v2170 = vunpack.c.l.b16 %v2035
    %v2171 = vunpack.c.l.b16 %v2036
    %v2172 = vunpack.c.l.b16 %v2037
    %v2173 = vunpack.c.l.b16 %v2038
    %v2174 = vunpack.c.l.b16 %v2039
    %v2175 = vunpack.c.l.b16 %v2040
    %v2176 = vunpack.c.l.b16 %v2041
    %v2177 = vunpack.c.l.b16 %v2042
    %v2178 = vunpack.c.l.b16 %v2043
    %v2179 = vunpack.c.l.b16 %v2044
    %v2180 = vunpack.c.l.b16 %v2045
    %v2181 = vunpack.c.l.b16 %v2046
    %v2182 = vunpack.c.l.b16 %v2047
    %v2183 = vunpack.c.l.b16 %v2048
    %v2184 = vunpack.c.l.b16 %v2049
    %v2185 = vunpack.c.l.b16 %v2050
    %v2186 = vunpack.c.l.b16 %v2051
    %v2187 = vpack.c.b16 %v2124, %v2123
    %v2188 = vpack.c.b16 %v2126, %v2125
    %v2189 = vpack.c.b16 %v2128, %v2127
    %v2190 = vpack.c.b16 %v2130, %v2129
    %v2191 = vpack.c.b16 %v2132, %v2131
    %v2192 = vpack.c.b16 %v2134, %v2133
    %v2193 = vpack.c.b16 %v2136, %v2135
    %v2194 = vpack.c.b16 %v2138, %v2137
    %v2195 = vpack.c.b16 %v2140, %v2139
    %v2196 = vpack.c.b16 %v2142, %v2141
    %v2197 = vpack.c.b16 %v2144, %v2143
    %v2198 = vpack.c.b16 %v2146, %v2145
    %v2199 = vpack.c.b16 %v2148, %v2147
    %v2200 = vpack.c.b16 %v2150, %v2149
    %v2201 = vpack.c.b16 %v2152, %v2151
    %v2202 = vpack.c.b16 %v2154, %v2153
    %v2203 = vpack.c.b16 %v2156, %v2155
    %v2204 = vpack.c.b16 %v2158, %v2157
    %v2205 = vpack.c.b16 %v2160, %v2159
    %v2206 = vpack.c.b16 %v2162, %v2161
    %v2207 = vpack.c.b16 %v2164, %v2163
    %v2208 = vpack.c.b16 %v2166, %v2165
    %v2209 = vpack.c.b16 %v2168, %v2167
    %v2210 = vpack.c.b16 %v2170, %v2169
    %v2211 = vpack.c.b16 %v2172, %v2171
    %v2212 = vpack.c.b16 %v2174, %v2173
    %v2213 = vpack.c.b16 %v2176, %v2175
    %v2214 = vpack.c.b16 %v2178, %v2177
    %v2215 = vpack.c.b16 %v2180, %v2179
    %v2216 = vpack.c.b16 %v2182, %v2181
    %v2217 = vpack.c.b16 %v2184, %v2183
    %v2218 = vpack.c.b16 %v2186, %v2185
    %2251 = vmatprep.subr.bf16.mxu0 0
    %2252 = vmatpush1.bf16.msra.mxu0 %v2194
    %2253 = vmatprep.subr.bf16.mxu0 0
    %2254 = vmatpush1.bf16.msra.mxu0 %v2193
    %2255 = vmatprep.subr.bf16.mxu0 0
    %2256 = vmatpush1.bf16.msra.mxu0 %v2192
    %2257 = vmatprep.subr.bf16.mxu0 0
    %2258 = vmatpush1.bf16.msra.mxu0 %v2191
    %2259 = vmatprep.subr.bf16.mxu0 0
    %2260 = vmatpush1.bf16.msra.mxu0 %v2190
    %2261 = vmatprep.subr.bf16.mxu0 0
    %2262 = vmatpush1.bf16.msra.mxu0 %v2189
    %2263 = vmatprep.subr.bf16.mxu0 0
    %2264 = vmatpush1.bf16.msra.mxu0 %v2188
    %2265 = vmatprep.subr.bf16.mxu0 0
    %2266 = vmatpush1.bf16.msra.mxu0 %v2187
    %2267 = vmatprep.subr.bf16.mxu0 0
    %2268 = vmatpush2.bf16.msra.mxu0 %v2202
    %2269 = vmatprep.subr.bf16.mxu0 0
    %2270 = vmatpush2.bf16.msra.mxu0 %v2201
    %2271 = vmatprep.subr.bf16.mxu0 0
    %2272 = vmatpush2.bf16.msra.mxu0 %v2200
    %2273 = vmatprep.subr.bf16.mxu0 0
    %2274 = vmatpush2.bf16.msra.mxu0 %v2199
    %2275 = vmatprep.subr.bf16.mxu0 0
    %2276 = vmatpush2.bf16.msra.mxu0 %v2198
    %2277 = vmatprep.subr.bf16.mxu0 0
    %2278 = vmatpush2.bf16.msra.mxu0 %v2197
    %2279 = vmatprep.subr.bf16.mxu0 0
    %2280 = vmatpush2.bf16.msra.mxu0 %v2196
    %2281 = vmatprep.subr.bf16.mxu0 0
    %2282 = vmatpush2.bf16.msra.mxu0 %v2195
    %2283 = vmatprep.mubr.bf16.mxu0 %v1985
    %2284 = vmatmul.mubr.bf16.gmra.mxu0 %v1984
    %v2285 = vpop.f32.mrf.mxu0
    %v2286 = vadd.f32 %v2057, %v2285
    %v2287 = vpop.f32.mrf.mxu0
    %v2288 = vpop.f32.mrf.mxu0
    %v2289 = vpop.f32.mrf.mxu0
    %2290 = vdwg.mxu0
    %2291 = vmatprep.subr.bf16.mxu0 0
    %2292 = vmatpush1.bf16.msra.mxu0 %v2210
    %2293 = vmatprep.subr.bf16.mxu0 0
    %2294 = vmatpush1.bf16.msra.mxu0 %v2209
    %2295 = vmatprep.subr.bf16.mxu0 0
    %2296 = vmatpush1.bf16.msra.mxu0 %v2208
    %2297 = vmatprep.subr.bf16.mxu0 0
    %2298 = vmatpush1.bf16.msra.mxu0 %v2207
    %2299 = vmatprep.subr.bf16.mxu0 0
    %2300 = vmatpush1.bf16.msra.mxu0 %v2206
    %2301 = vmatprep.subr.bf16.mxu0 0
    %2302 = vmatpush1.bf16.msra.mxu0 %v2205
    %2303 = vmatprep.subr.bf16.mxu0 0
    %2304 = vmatpush1.bf16.msra.mxu0 %v2204
    %2305 = vmatprep.subr.bf16.mxu0 0
    %2306 = vmatpush1.bf16.msra.mxu0 %v2203
    %2307 = vmatprep.subr.bf16.mxu0 0
    %2308 = vmatpush2.bf16.msra.mxu0 %v2218
    %2309 = vmatprep.subr.bf16.mxu0 0
    %2310 = vmatpush2.bf16.msra.mxu0 %v2217
    %2311 = vmatprep.subr.bf16.mxu0 0
    %2312 = vmatpush2.bf16.msra.mxu0 %v2216
    %2313 = vmatprep.subr.bf16.mxu0 0
    %2314 = vmatpush2.bf16.msra.mxu0 %v2215
    %2315 = vmatprep.subr.bf16.mxu0 0
    %2316 = vmatpush2.bf16.msra.mxu0 %v2214
    %2317 = vmatprep.subr.bf16.mxu0 0
    %2318 = vmatpush2.bf16.msra.mxu0 %v2213
    %2319 = vmatprep.subr.bf16.mxu0 0
    %2320 = vmatpush2.bf16.msra.mxu0 %v2212
    %2321 = vmatprep.subr.bf16.mxu0 0
    %2322 = vmatpush2.bf16.msra.mxu0 %v2211
    %2323 = vmatprep.mubr.bf16.mxu0 %v1987
    %2324 = vmatmul.mubr.bf16.gmra.mxu0 %v1986
    %v2325 = vpop.f32.mrf.mxu0
    %v2326 = vadd.f32 %v2286, %v2325
    %v2327 = vpop.f32.mrf.mxu0
    %v2328 = vpop.f32.mrf.mxu0
    %v2329 = vpop.f32.mrf.mxu0
    %2330 = vdwg.mxu0
    %2331 = vst [vmem:[#allocation8] sm:$0xff] %v2326
    // Predicated region
    $region42: #{tpu_custom_call.1} parent=1 // pred_check
      _
    $region43: #{tpu_custom_call.1} parent=1 // pred_check_branch
      %2333 = sbr.rel (0) target = $region45
    $region44: #{tpu_custom_call.1} parent=1 // pred_region
      %s2335 = ssub.s32 128, 128
      %2336 = vsyncadd [#allocation4], %s2335
      %s2338 = sshll.u32 [#allocation8], 4
      %s2339 = int_to_ptr.vmem [resolvable:$true] %s2338
      %2341 = dma.vmem_to_hbm [thread:$0]  %s2339, 128, %s7, [#allocation4]
    $region45: #{tpu_custom_call.1} parent=1 // pred_fallthru
      _
    // Predicated region
    $region46: #{tpu_custom_call.1} parent=1 // pred_check
      _
    $region47: #{tpu_custom_call.1} parent=1 // pred_check_branch
      %2343 = sbr.rel (0) target = $region49
    $region48: #{tpu_custom_call.1} parent=1 // pred_region
      %2344 = dma.done [#allocation4], 128
    $region49: #{tpu_custom_call.1} parent=1 // pred_fallthru
      _
    %2345 = vsyncpa [#allocation3], 1
    %2346 = vsyncpa [#allocation6], 1
    %2347 = vsyncpa [#allocation4], 1

</llo_original>
